<compile_context>
chip_gen: v5e
topology: v5e:2x2
jax: 0.10.0
libtpu: 0.0.40
codegen_flags: <defaults>
</compile_context>

<pallas_src>
import jax
import jax.numpy as jnp
import numpy as np
from jax.experimental import pallas as pl
from jax.experimental.pallas import tpu as pltpu

# Force full-f32 matmuls everywhere (kernel dot + reference einsum) so the
# numerical comparison is apples-to-apples.
jax.config.update("jax_default_matmul_precision", "highest")


def _round_up(x, m):
    return ((x + m - 1) // m) * m


def _largest_divisor_leq(n, cap):
    """Largest divisor of n that is <= cap (n, cap small positive ints)."""
    best = 1
    d = 1
    while d * d <= n:
        if n % d == 0:
            if d <= cap:
                best = max(best, d)
            q = n // d
            if q <= cap:
                best = max(best, q)
        d += 1
    return best


def _vmem_budget_bytes():
    """Generation-aware VMEM budget (limit for double-buffered feature tiles)."""
    cap = None
    try:
        cap = getattr(pltpu.get_tpu_info(), "vmem_capacity_bytes", None)
    except Exception:
        cap = None
    if cap is None:
        cap = 64 * 1024 * 1024
    if cap <= 64 * 1024 * 1024:
        # v7x: 64 MiB physical per TC -> leave headroom for Mosaic scratch,
        # semaphores and the small eff/SMEM blocks.
        return 48 * 1024 * 1024
    # v5e / v6e: 128 MiB physical -> allow large, fully double-buffered tiles.
    return min(cap - 24 * 1024 * 1024, 104 * 1024 * 1024)


def _pick_hw_tiling(C, HW, B, itemsize, vmem_budget):
    """Pick a lane-dense HW tile t (multiple of 128). Returns (t, num_tiles, hw_pad)."""
    bytes_per_col = C * itemsize
    # Target ~2 MiB per [C, t] feature block to amortize per-grid-step overhead.
    t = _round_up(max(128, (2 * 1024 * 1024) // bytes_per_col), 128)
    # Keep the double-buffered working set (5 feature blocks x 2) under ~75% budget.
    max_t = int(0.75 * vmem_budget) // (10 * bytes_per_col)
    max_t = max(128, (max_t // 128) * 128)
    hw128 = _round_up(HW, 128)
    t = min(t, max_t, hw128)

    if HW % 128 == 0:
        # Choose t as a divisor of HW -> no wrapper-side pad / output slice copies.
        units = HW // 128
        cap_units = max(1, t // 128)
        if B == 1 and units >= 2:
            # Guarantee >=2 grid steps so both v7x TensorCores get work.
            cap_units = max(1, min(cap_units, units // 2))
        t = 128 * _largest_divisor_leq(units, cap_units)
        return t, HW // t, HW

    # Ragged HW tail: minimal pad/slice fallback.
    if B == 1 and hw128 >= 256:
        t = min(t, _round_up(max(128, hw128 // 2), 128))
    num_tiles = -(-hw128 // t)
    return t, num_tiles, num_tiles * t


# ----------------------------- Pallas kernel ------------------------------ #
def _sagate_kernel(bdiff_ref, eff_rgb_ref, eff_hha_ref, rgb_ref, hha_ref,
                   rgb_out_ref, hha_out_ref, merge_ref):
    rgb = rgb_ref[0].astype(jnp.float32)      # [C, T]
    hha = hha_ref[0].astype(jnp.float32)      # [C, T]

    # Fused gate: difference of the two 1x1-conv logits over the (folded)
    # recalibrated features -> two skinny MXU dots, f32 accumulation.
    diff = (
        jnp.dot(eff_rgb_ref[0], rgb, preferred_element_type=jnp.float32)
        + jnp.dot(eff_hha_ref[0], hha, preferred_element_type=jnp.float32)
        + bdiff_ref[0]
    )                                          # [1, T]

    # softmax over the 2 gate channels == sigmoid of the logit difference.
    a_l = jax.nn.sigmoid(diff)                 # attention for rgb
    a_r = 1.0 - a_l                            # attention for hha

    merge = rgb * a_l + hha * a_r              # [C, T]
    merge_ref[0] = merge.astype(merge_ref.dtype)
    rgb_out_ref[0] = jnp.maximum((rgb + merge) * 0.5, 0.0).astype(rgb_out_ref.dtype)
    hha_out_ref[0] = jnp.maximum((hha + merge) * 0.5, 0.0).astype(hha_out_ref.dtype)


# ------------------------------- Wrapper ----------------------------------- #
def _fsp_channel_weight(mean_guide, mean_main, w1, b1, w2, b2):
    """FilterLayer on cat([guide, main]): Linear -> ReLU -> Linear -> Sigmoid."""
    comb = jnp.concatenate([mean_guide, mean_main], axis=1)        # [B, 2C]
    h = jnp.maximum(comb @ w1 + b1, 0.0)                           # [B, hidden]
    return jax.nn.sigmoid(h @ w2.T + b2[:, 0][None, :])            # [B, C]


def sagate_pallas(rgb, hha, params, *, out_dtype=None):
    """rgb, hha: [B, C, H, W] (NCHW). Returns (rgb_out, hha_out, merge).

    out_dtype lets callers stream bf16 I/O (halves HBM traffic of this
    memory-bound kernel); gate dot + sigmoid always accumulate in f32.
    """
    B, C, H, W = rgb.shape
    HW = H * W
    io_dtype = jnp.dtype(out_dtype) if out_dtype is not None else rgb.dtype
    itemsize = jnp.dtype(io_dtype).itemsize

    # ---- tiny per-batch prologue in plain JAX (GAP + FSP FCs + gate folding) --
    # TODO(synk): this mean is an unavoidable extra read pass over rgb/hha unless
    # equivalent per-channel statistics are already available upstream.
    mean_rgb = jnp.mean(rgb.astype(jnp.float32), axis=(2, 3))      # [B, C]
    mean_hha = jnp.mean(hha.astype(jnp.float32), axis=(2, 3))      # [B, C]
    cw_rgb = _fsp_channel_weight(mean_hha, mean_rgb,
                                 params["w1r"], params["b1r"],
                                 params["w2r"], params["b2r"])     # [B, C]
    cw_hha = _fsp_channel_weight(mean_rgb, mean_hha,
                                 params["w1h"], params["b1h"],
                                 params["w2h"], params["b2h"])     # [B, C]

    # Fold both 1x1 gate convs into per-batch effective weights on rgb / hha:
    #   rec_rgb = rgb + cw_rgb*hha ; rec_hha = hha + cw_hha*rgb
    #   logit_l - logit_r = (wd_top + cw_hha*wd_bot).rgb
    #                     + (wd_bot + cw_rgb*wd_top).hha + (b_l - b_r)
    wd_top = params["wg_rgb"][:C, 0] - params["wg_hha"][:C, 0]     # [C]
    wd_bot = params["wg_rgb"][C:, 0] - params["wg_hha"][C:, 0]     # [C]
    eff_rgb = (wd_top[None, :] + cw_hha * wd_bot[None, :])[:, None, :]   # [B,1,C]
    eff_hha = (wd_bot[None, :] + cw_rgb * wd_top[None, :])[:, None, :]   # [B,1,C]
    eff_rgb = eff_rgb.astype(jnp.float32)
    eff_hha = eff_hha.astype(jnp.float32)
    bdiff = jnp.reshape(params["bg_rgb"][0, 0] - params["bg_hha"][0, 0],
                        (1,)).astype(jnp.float32)

    # ---- C-adaptive, lane-dense HW tiling -------------------------------------
    vmem_budget = _vmem_budget_bytes()
    t, num_tiles, hw_pad = _pick_hw_tiling(C, HW, B, itemsize, vmem_budget)

    rgb_f = rgb.reshape(B, C, HW).astype(io_dtype)     # reshape is free (contiguous)
    hha_f = hha.reshape(B, C, HW).astype(io_dtype)
    padded = hw_pad != HW
    if padded:
        # Ragged-HW fallback only; common feature-map sizes never take this path.
        pad = ((0, 0), (0, 0), (0, hw_pad - HW))
        rgb_f = jnp.pad(rgb_f, pad)
        hha_f = jnp.pad(hha_f, pad)

    feat_spec = pl.BlockSpec((1, C, t), lambda b, i: (b, 0, i))
    eff_spec = pl.BlockSpec((1, 1, C), lambda b, i: (b, 0, 0))
    smem_spec = pl.BlockSpec(memory_space=pltpu.MemorySpace.SMEM)

    out_shape = tuple(
        jax.ShapeDtypeStruct((B, C, hw_pad), io_dtype) for _ in range(3)
    )

    # 2 input + 3 output [C, t] blocks per step, double-buffered + headroom.
    step_bytes = 5 * C * t * itemsize + 2 * C * 4
    vmem_limit = int(min(vmem_budget, max(3 * step_bytes, 16 * 1024 * 1024)))

    cost = pl.CostEstimate(
        flops=int(10 * B * C * hw_pad),            # 2 skinny dots + elementwise
        transcendentals=int(B * hw_pad),           # sigmoid exp per pixel
        bytes_accessed=int(5 * B * C * hw_pad * itemsize),
    )

    fn = pl.pallas_call(
        _sagate_kernel,
        grid=(B, num_tiles),
        in_specs=[smem_spec, eff_spec, eff_spec, feat_spec, feat_spec],
        out_specs=(feat_spec, feat_spec, feat_spec),
        out_shape=out_shape,
        compiler_params=pltpu.CompilerParams(
            dimension_semantics=("parallel", "parallel"),
            vmem_limit_bytes=vmem_limit,
        ),
        cost_estimate=cost,
    )
    rgb_out, hha_out, merge = fn(bdiff, eff_rgb, eff_hha, rgb_f, hha_f)

    if padded:
        rgb_out = rgb_out[:, :, :HW]
        hha_out = hha_out[:, :, :HW]
        merge = merge[:, :, :HW]
    rgb_out = rgb_out.reshape(B, C, H, W)
    hha_out = hha_out.reshape(B, C, H, W)
    merge = merge.reshape(B, C, H, W)
    return rgb_out, hha_out, merge


# --------------------------- Pure-JAX reference ----------------------------- #
def sagate_ref(rgb, hha, p):
    mean_rgb = jnp.mean(rgb, axis=(2, 3))   # [B, C]
    mean_hha = jnp.mean(hha, axis=(2, 3))

    def fsp_cw(guide_mean, main_mean, w1, b1, w2, b2):
        comb = jnp.concatenate([guide_mean, main_mean], axis=1)      # [B, 2C]
        h = jnp.maximum(comb @ w1 + b1, 0.0)                         # [B, hidden]
        y = jax.nn.sigmoid(h @ w2.T + b2[:, 0][None, :])             # [B, C]
        return y[:, :, None, None]

    cw_rgb = fsp_cw(mean_hha, mean_rgb, p["w1r"], p["b1r"], p["w2r"], p["b2r"])
    cw_hha = fsp_cw(mean_rgb, mean_hha, p["w1h"], p["b1h"], p["w2h"], p["b2h"])
    rec_rgb = rgb + cw_rgb * hha
    rec_hha = hha + cw_hha * rgb

    cat = jnp.concatenate([rec_rgb, rec_hha], axis=1)                # [B, 2C, H, W]
    logit_l = jnp.einsum("bchw,c->bhw", cat, p["wg_rgb"][:, 0]) + p["bg_rgb"][0, 0]
    logit_r = jnp.einsum("bchw,c->bhw", cat, p["wg_hha"][:, 0]) + p["bg_hha"][0, 0]
    att = jax.nn.softmax(jnp.stack([logit_l, logit_r], axis=1), axis=1)
    a_l, a_r = att[:, 0:1], att[:, 1:2]
    merge = rgb * a_l + hha * a_r
    rgb_out = jnp.maximum((rgb + merge) * 0.5, 0.0)
    hha_out = jnp.maximum((hha + merge) * 0.5, 0.0)
    return rgb_out, hha_out, merge


# ---------------------------------- Main ------------------------------------ #
def make_params(key, in_planes, out_planes, reduction):
    hidden = out_planes // reduction
    C = out_planes
    C2 = 2 * in_planes
    keys = jax.random.split(key, 12)
    scale = 0.2

    def n(k, shape):
        return scale * jax.random.normal(k, shape, dtype=jnp.float32)

    return {
        # fsp_rgb FilterLayer fc params (stored transposed for matmul use)
        "w1r": n(keys[0], (C2, hidden)),
        "b1r": n(keys[1], (1, hidden)),
        "w2r": n(keys[2], (C, hidden)),
        "b2r": n(keys[3], (C, 1)),
        # fsp_hha FilterLayer fc params
        "w1h": n(keys[4], (C2, hidden)),
        "b1h": n(keys[5], (1, hidden)),
        "w2h": n(keys[6], (C, hidden)),
        "b2h": n(keys[7], (C, 1)),
        # gate_rgb / gate_hha 1x1 conv (2C -> 1) params
        "wg_rgb": n(keys[8], (C2, 1)),
        "bg_rgb": n(keys[9], (1, 1)),
        "wg_hha": n(keys[10], (C2, 1)),
        "bg_hha": n(keys[11], (1, 1)),
    }


if __name__ == "__main__":
    B, C, H, W = 2, 32, 16, 16          # in_planes = out_planes = 32
    reduction = 16                       # hidden = 2

    key = jax.random.PRNGKey(0)
    k_rgb, k_hha, k_par = jax.random.split(key, 3)
    rgb = jax.random.normal(k_rgb, (B, C, H, W), dtype=jnp.float32)
    hha = jax.random.normal(k_hha, (B, C, H, W), dtype=jnp.float32)
    params = make_params(k_par, C, C, reduction)

    rgb_out, hha_out, merge = sagate_pallas(rgb, hha, params)
    jax.block_until_ready((rgb_out, hha_out, merge))

    rgb_r, hha_r, merge_r = sagate_ref(rgb, hha, params)
    np.testing.assert_allclose(np.asarray(rgb_out), np.asarray(rgb_r),
                               rtol=1e-4, atol=2e-5)
    np.testing.assert_allclose(np.asarray(hha_out), np.asarray(hha_r),
                               rtol=1e-4, atol=2e-5)
    np.testing.assert_allclose(np.asarray(merge), np.asarray(merge_r),
                               rtol=1e-4, atol=2e-5)

    print("KERNEL_OK")
</pallas_src>

<mosaic_0001>
module attributes {stable_mosaic.version = 11 : i64} {
  func.func @_sagate_kernel(%arg0: i32, %arg1: i32, %arg2: memref<1xf32, #tpu.memory_space<smem>>, %arg3: memref<1x1x32xf32, #tpu.memory_space<vmem>>, %arg4: memref<1x1x32xf32, #tpu.memory_space<vmem>>, %arg5: memref<1x32x256xf32, #tpu.memory_space<vmem>>, %arg6: memref<1x32x256xf32, #tpu.memory_space<vmem>>, %arg7: memref<1x32x256xf32, #tpu.memory_space<vmem>>, %arg8: memref<1x32x256xf32, #tpu.memory_space<vmem>>, %arg9: memref<1x32x256xf32, #tpu.memory_space<vmem>>) attributes {dimension_semantics = [#tpu.dimension_semantics<parallel>, #tpu.dimension_semantics<parallel>], iteration_bounds = array<i64: 2, 1>, scalar_prefetch = 0 : i64, scratch_operands = 0 : i64, tpu.core_type = #tpu.core_type<tc>, window_params = [{transform_indices = @transform_0, window_bounds = array<i64: 1>}, {transform_indices = @transform_1, window_bounds = array<i64: 1, 1, 32>}, {transform_indices = @transform_2, window_bounds = array<i64: 1, 1, 32>}, {transform_indices = @transform_3, window_bounds = array<i64: 1, 32, 256>}, {transform_indices = @transform_4, window_bounds = array<i64: 1, 32, 256>}, {transform_indices = @transform_5, window_bounds = array<i64: 1, 32, 256>}, {transform_indices = @transform_6, window_bounds = array<i64: 1, 32, 256>}, {transform_indices = @transform_7, window_bounds = array<i64: 1, 32, 256>}]} {
    %c0 = arith.constant 0 : index
    %c0_0 = arith.constant 0 : index
    %c0_1 = arith.constant 0 : index
    %0 = vector.load %arg5[%c0, %c0_0, %c0_1] : memref<1x32x256xf32, #tpu.memory_space<vmem>>, vector<1x32x256xf32>
    %1 = vector.shape_cast %0 : vector<1x32x256xf32> to vector<32x256xf32>
    %c0_2 = arith.constant 0 : index
    %c0_3 = arith.constant 0 : index
    %c0_4 = arith.constant 0 : index
    %2 = vector.load %arg6[%c0_2, %c0_3, %c0_4] : memref<1x32x256xf32, #tpu.memory_space<vmem>>, vector<1x32x256xf32>
    %3 = vector.shape_cast %2 : vector<1x32x256xf32> to vector<32x256xf32>
    %c0_5 = arith.constant 0 : index
    %c0_6 = arith.constant 0 : index
    %c0_7 = arith.constant 0 : index
    %4 = vector.load %arg3[%c0_5, %c0_6, %c0_7] : memref<1x1x32xf32, #tpu.memory_space<vmem>>, vector<1x1x32xf32>
    %5 = vector.shape_cast %4 : vector<1x1x32xf32> to vector<1x32xf32>
    %cst = arith.constant dense<0.000000e+00> : vector<1x256xf32>
    %6 = tpu.matmul %5, %1, %cst {dimension_numbers = #tpu.dot_dimension_numbers<[1], [0], [0], [1], [0, 0, 1, 1], [], []>, precision = #tpu.contract_precision<fp32>} : vector<1x32xf32>, vector<32x256xf32>, vector<1x256xf32> -> vector<1x256xf32>
    %c0_8 = arith.constant 0 : index
    %c0_9 = arith.constant 0 : index
    %c0_10 = arith.constant 0 : index
    %7 = vector.load %arg4[%c0_8, %c0_9, %c0_10] : memref<1x1x32xf32, #tpu.memory_space<vmem>>, vector<1x1x32xf32>
    %8 = vector.shape_cast %7 : vector<1x1x32xf32> to vector<1x32xf32>
    %cst_11 = arith.constant dense<0.000000e+00> : vector<1x256xf32>
    %9 = tpu.matmul %8, %3, %cst_11 {dimension_numbers = #tpu.dot_dimension_numbers<[1], [0], [0], [1], [0, 0, 1, 1], [], []>, precision = #tpu.contract_precision<fp32>} : vector<1x32xf32>, vector<32x256xf32>, vector<1x256xf32> -> vector<1x256xf32>
    %10 = arith.addf %6, %9 : vector<1x256xf32>
    %c0_12 = arith.constant 0 : index
    %11 = memref.load %arg2[%c0_12] : memref<1xf32, #tpu.memory_space<smem>>
    %12 = vector.broadcast %11 : f32 to vector<1x256xf32>
    %13 = arith.addf %10, %12 : vector<1x256xf32>
    %14 = arith.negf %13 : vector<1x256xf32>
    %15 = math.exp %14 : vector<1x256xf32>
    %cst_13 = arith.constant 1.000000e+00 : f32
    %16 = vector.broadcast %cst_13 : f32 to vector<1x256xf32>
    %17 = arith.addf %16, %15 : vector<1x256xf32>
    %18 = arith.divf %16, %17 : vector<1x256xf32>
    %cst_14 = arith.constant 1.000000e+00 : f32
    %19 = vector.broadcast %cst_14 : f32 to vector<1x256xf32>
    %20 = arith.subf %19, %18 : vector<1x256xf32>
    %21 = vector.broadcast %18 : vector<1x256xf32> to vector<32x256xf32>
    %22 = arith.mulf %1, %21 : vector<32x256xf32>
    %23 = vector.broadcast %20 : vector<1x256xf32> to vector<32x256xf32>
    %24 = arith.mulf %3, %23 : vector<32x256xf32>
    %25 = arith.addf %22, %24 : vector<32x256xf32>
    %c0_15 = arith.constant 0 : index
    %c0_16 = arith.constant 0 : index
    %c0_17 = arith.constant 0 : index
    %26 = vector.load %arg9[%c0_15, %c0_16, %c0_17] : memref<1x32x256xf32, #tpu.memory_space<vmem>>, vector<1x32x256xf32>
    %27 = vector.shape_cast %26 : vector<1x32x256xf32> to vector<32x256xf32>
    %28 = vector.shape_cast %25 : vector<32x256xf32> to vector<1x32x256xf32>
    tpu.vector_store %arg9[%c0_15, %c0_16, %c0_17], %28 {strides = array<i32>} : memref<1x32x256xf32, #tpu.memory_space<vmem>>, vector<1x32x256xf32>,
    %29 = arith.addf %1, %25 : vector<32x256xf32>
    %cst_18 = arith.constant 5.000000e-01 : f32
    %30 = vector.broadcast %cst_18 : f32 to vector<32x256xf32>
    %31 = arith.mulf %29, %30 : vector<32x256xf32>
    %cst_19 = arith.constant 0.000000e+00 : f32
    %32 = vector.broadcast %cst_19 : f32 to vector<32x256xf32>
    %33 = arith.maximumf %31, %32 : vector<32x256xf32>
    %c0_20 = arith.constant 0 : index
    %c0_21 = arith.constant 0 : index
    %c0_22 = arith.constant 0 : index
    %34 = vector.load %arg7[%c0_20, %c0_21, %c0_22] : memref<1x32x256xf32, #tpu.memory_space<vmem>>, vector<1x32x256xf32>
    %35 = vector.shape_cast %34 : vector<1x32x256xf32> to vector<32x256xf32>
    %36 = vector.shape_cast %33 : vector<32x256xf32> to vector<1x32x256xf32>
    tpu.vector_store %arg7[%c0_20, %c0_21, %c0_22], %36 {strides = array<i32>} : memref<1x32x256xf32, #tpu.memory_space<vmem>>, vector<1x32x256xf32>,
    %37 = arith.addf %3, %25 : vector<32x256xf32>
    %cst_23 = arith.constant 5.000000e-01 : f32
    %38 = vector.broadcast %cst_23 : f32 to vector<32x256xf32>
    %39 = arith.mulf %37, %38 : vector<32x256xf32>
    %cst_24 = arith.constant 0.000000e+00 : f32
    %40 = vector.broadcast %cst_24 : f32 to vector<32x256xf32>
    %41 = arith.maximumf %39, %40 : vector<32x256xf32>
    %c0_25 = arith.constant 0 : index
    %c0_26 = arith.constant 0 : index
    %c0_27 = arith.constant 0 : index
    %42 = vector.load %arg8[%c0_25, %c0_26, %c0_27] : memref<1x32x256xf32, #tpu.memory_space<vmem>>, vector<1x32x256xf32>
    %43 = vector.shape_cast %42 : vector<1x32x256xf32> to vector<32x256xf32>
    %44 = vector.shape_cast %41 : vector<32x256xf32> to vector<1x32x256xf32>
    tpu.vector_store %arg8[%c0_25, %c0_26, %c0_27], %44 {strides = array<i32>} : memref<1x32x256xf32, #tpu.memory_space<vmem>>, vector<1x32x256xf32>,
    return
  }
  func.func @transform_0(%arg0: i32, %arg1: i32) -> i32 {
    %c0_i32 = arith.constant 0 : i32
    %c0_i32_0 = arith.constant 0 : i32
    return %c0_i32 : i32
  }
  func.func @transform_1(%arg0: i32, %arg1: i32) -> (i32, i32, i32) {
    %c0_i32 = arith.constant 0 : i32
    %c0_i32_0 = arith.constant 0 : i32
    %c0_i32_1 = arith.constant 0 : i32
    return %arg0, %c0_i32, %c0_i32_0 : i32, i32, i32
  }
  func.func @transform_2(%arg0: i32, %arg1: i32) -> (i32, i32, i32) {
    %c0_i32 = arith.constant 0 : i32
    %c0_i32_0 = arith.constant 0 : i32
    %c0_i32_1 = arith.constant 0 : i32
    return %arg0, %c0_i32, %c0_i32_0 : i32, i32, i32
  }
  func.func @transform_3(%arg0: i32, %arg1: i32) -> (i32, i32, i32) {
    %c0_i32 = arith.constant 0 : i32
    %c0_i32_0 = arith.constant 0 : i32
    return %arg0, %c0_i32, %arg1 : i32, i32, i32
  }
  func.func @transform_4(%arg0: i32, %arg1: i32) -> (i32, i32, i32) {
    %c0_i32 = arith.constant 0 : i32
    %c0_i32_0 = arith.constant 0 : i32
    return %arg0, %c0_i32, %arg1 : i32, i32, i32
  }
  func.func @transform_5(%arg0: i32, %arg1: i32) -> (i32, i32, i32) {
    %c0_i32 = arith.constant 0 : i32
    %c0_i32_0 = arith.constant 0 : i32
    return %arg0, %c0_i32, %arg1 : i32, i32, i32
  }
  func.func @transform_6(%arg0: i32, %arg1: i32) -> (i32, i32, i32) {
    %c0_i32 = arith.constant 0 : i32
    %c0_i32_0 = arith.constant 0 : i32
    return %arg0, %c0_i32, %arg1 : i32, i32, i32
  }
  func.func @transform_7(%arg0: i32, %arg1: i32) -> (i32, i32, i32) {
    %c0_i32 = arith.constant 0 : i32
    %c0_i32_0 = arith.constant 0 : i32
    return %arg0, %c0_i32, %arg1 : i32, i32, i32
  }
}

</mosaic_0001>

<llo_original>
// kernel: tpu_custom_call.1
$region0: #{tpu_custom_call.1}
  #allocation0 [shape = 'u32[]', space=smem, size = 0x4, offset = 0x4, fixed_abs, tag = 'smem constant byte address 0x4 - core index']
  #allocation1 [shape = 'u32[72,128]{1,0:T(1,128)}', space=vmem, size = 0x9000, scoped, tag = 'internal scratch']
  #allocation2 [shape = 'f32[1]{0:T(128)S(6)}', space=smem, size = 0x200, scoped, tag = 'scoped memory for tpu_custom_call.1']
  %s0 = inlined_call_operand.<no memory space> [shape: f32[1], index: 0, kind: input, shape index: {}]
  %s1 = inlined_call_operand.vmem [shape: f32[2,1,32], index: 1, kind: input, shape index: {}]
  %s2 = inlined_call_operand.hbm [shape: f32[2,1,32], index: 2, kind: input, shape index: {}]
  %s3 = inlined_call_operand.hbm [shape: f32[2,32,256], index: 3, kind: input, shape index: {}]
  %s4 = inlined_call_operand.hbm [shape: f32[2,32,256], index: 4, kind: input, shape index: {}]
  %s5 = inlined_call_operand.hbm [shape: f32[2,32,256], index: 5, kind: output, shape index: {0}]
  %s6 = inlined_call_operand.hbm [shape: f32[2,32,256], index: 6, kind: output, shape index: {1}]
  %s7 = inlined_call_operand.hbm [shape: f32[2,32,256], index: 7, kind: output, shape index: {2}]
  %8 = xla_tuple %s5, %s6, %s7
  %s9 = sld [smem:[#allocation0]]
  $region81: #{tpu_custom_call.1} parent=0
    _
  %s11 = ssub.s32 1, %s9
  %s12 = scalar_select 0, %s11, %s9
  %13 = sst [smem:[#allocation2]] %s0
  $region1: #{tpu_custom_call.1} parent=0
    #allocation3 [shape = 'u8[1024]{0}', space=vmem, size = 0x400, scoped, tag = 'input window, operand 2']
    #allocation4 [shape = 's32[2]{0}', space=sflag, size = 0x8, scoped, tag = 'scoped memory for tpu_custom_call.1']
    #allocation5 [shape = 's32[2]{0}', space=sflag, size = 0x8, scoped, tag = 'scoped memory for tpu_custom_call.1']
    #allocation6 [shape = 'u8[65536]{0}', space=vmem, size = 0x10000, scoped, tag = 'input window, operand 3']
    #allocation7 [shape = 's32[2]{0}', space=sflag, size = 0x8, scoped, tag = 'scoped memory for tpu_custom_call.1']
    #allocation8 [shape = 'u8[65536]{0}', space=vmem, size = 0x10000, scoped, tag = 'input window, operand 4']
    #allocation9 [shape = 'u8[65536]{0}', space=vmem, size = 0x10000, scoped, tag = 'output window, operand 0']
    #allocation10 [shape = 'u8[65536]{0}', space=vmem, size = 0x10000, scoped, tag = 'output window, operand 1']
    #allocation11 [shape = 's32[2]{0}', space=sflag, size = 0x8, scoped, tag = 'scoped memory for tpu_custom_call.1']
    #allocation12 [shape = 'u8[65536]{0}', space=vmem, size = 0x10000, scoped, tag = 'output window, operand 2']
    %14 = vsyncpa [#allocation4], 0
    %s15 = scalar_lea.sflag [#allocation4], 1
    %16 = vsyncpa %s15, 0
    %17 = vsyncpa [#allocation7], 0
    %s18 = scalar_lea.sflag [#allocation7], 1
    %19 = vsyncpa %s18, 0
    %20 = vsyncpa [#allocation5], 0
    %s21 = scalar_lea.sflag [#allocation5], 1
    %22 = vsyncpa %s21, 0
    %23 = vsyncpa [#allocation11], 0
    %s24 = scalar_lea.sflag [#allocation11], 1
    %25 = vsyncpa %s24, 0
    loop: start=0, step=1, limit=4
    $region2: #{tpu_custom_call.1} parent=1 // loop_pre_header
      _
    $region3: #{tpu_custom_call.1} parent=1 // loop_header
      %s27 = sphi 0, %s31
      %p28 = scmp.ge.s32.totalorder %s27, 4
      %s34 = sphi 0, %s46
      %s35 = sphi 0, %s42
      %s36 = sphi 0, %s34
      %s37 = sphi 0, %s35
      %s38 = sphi 0, %s36
      %s39 = sphi 0, %s37
      %s47 = sphi 0, %s47
      %s49 = sphi 0, %s47
      %s50 = sphi 0, %s49
      %s64 = sphi 0, %s50
      %s70 = sphi 0, %s72
      %s73 = sphi 0, %s70
      %s74 = sphi 0, %s73
      %s90 = sphi 0, %s74
      %s96 = sphi 0, %s98
      %s99 = sphi 0, %s96
      %s100 = sphi 0, %s99
      %s116 = sphi 0, %s100
      %s124 = sphi 0, %s126
      %s127 = sphi 0, %s124
      %s128 = sphi 0, %s127
      %s144 = sphi 0, %s128
      %s152 = sphi 0, %s154
      %s155 = sphi 0, %s152
      %s156 = sphi 0, %s155
      %s172 = sphi 0, %s156
      %s180 = sphi 0, %s182
      %s183 = sphi 0, %s180
      %s184 = sphi 0, %s183
      %s200 = sphi 0, %s184
      %s208 = sphi 0, %s210
      %s211 = sphi 0, %s208
      %s212 = sphi 0, %s211
      %s228 = sphi 0, %s212
      %s236 = sphi 0, %s238
      %s239 = sphi 0, %s236
      %s240 = sphi 0, %s239
      %s256 = sphi 0, %s240
    $region4: #{tpu_custom_call.1} parent=1 // loop_header_branch
      %30 = sbr.rel (%p28) target = $region8
    $region5: #{tpu_custom_call.1} parent=1 // loop_body
      %s32 = ssub.s32 %s27, 1
      %s33 = ssub.s32 %s27, 2
      %s40 = sadd.s32 1, %s35
      %p41 = scmp.ge.s32.totalorder %s40, 1
      %s42 = scalar_select %p41, 0, %s40
      %s43 = sadd.s32 1, %s34
      %s44 = scalar_select %p41, %s43, %s34
      %p45 = scmp.ge.s32.totalorder %s44, 2
      %s46 = scalar_select %p45, 0, %s44
      %s48 = sadd.s32 %s47, 1
      %p51 = scmp.eq.s32.totalorder %s27, 1
      %p52 = scmp.ne.s32.totalorder %s47, %s49
      %p53 = scmp.eq.s32.totalorder %s27, 0
      %p54 = por %p52, %p53
      %p55 = scmp.ne.s32.totalorder %s47, %s49
      %p56 = scmp.eq.s32.totalorder %s32, 1
      %p57 = por %p55, %p56
      %p58 = scmp.ne.s32.totalorder %s49, %s50
      %p59 = scmp.eq.s32.totalorder %s32, 0
      %p60 = por %p58, %p59
      %p61 = scmp.ne.s32.totalorder %s49, %s50
      %p62 = scmp.eq.s32.totalorder %s33, 1
      %p63 = por %p61, %p62
      %p65 = scmp.ne.s32.totalorder %s50, %s64
      %p66 = scmp.eq.s32.totalorder %s33, 0
      %p67 = por %p65, %p66
      %s68 = ssub.s32 %s34, %s46
      %p69 = scmp.eq.s32.totalorder %s68, 0
      %s71 = sadd.s32 %s70, 1
      %s72 = scalar_select %p69, %s70, %s71
      %p75 = pneg %p69
      %p76 = scmp.eq.s32.totalorder %s27, 1
      %p77 = por %p75, %p76
      %p78 = scmp.ne.s32.totalorder %s70, %s73
      %p79 = scmp.eq.s32.totalorder %s27, 0
      %p80 = por %p78, %p79
      %p81 = scmp.ne.s32.totalorder %s70, %s73
      %p82 = scmp.eq.s32.totalorder %s32, 1
      %p83 = por %p81, %p82
      %p84 = scmp.ne.s32.totalorder %s73, %s74
      %p85 = scmp.eq.s32.totalorder %s32, 0
      %p86 = por %p84, %p85
      %p87 = scmp.ne.s32.totalorder %s73, %s74
      %p88 = scmp.eq.s32.totalorder %s33, 1
      %p89 = por %p87, %p88
      %p91 = scmp.ne.s32.totalorder %s74, %s90
      %p92 = scmp.eq.s32.totalorder %s33, 0
      %p93 = por %p91, %p92
      %s94 = ssub.s32 %s34, %s46
      %p95 = scmp.eq.s32.totalorder %s94, 0
      %s97 = sadd.s32 %s96, 1
      %s98 = scalar_select %p95, %s96, %s97
      %p101 = pneg %p95
      %p102 = scmp.eq.s32.totalorder %s27, 1
      %p103 = por %p101, %p102
      %p104 = scmp.ne.s32.totalorder %s96, %s99
      %p105 = scmp.eq.s32.totalorder %s27, 0
      %p106 = por %p104, %p105
      %p107 = scmp.ne.s32.totalorder %s96, %s99
      %p108 = scmp.eq.s32.totalorder %s32, 1
      %p109 = por %p107, %p108
      %p110 = scmp.ne.s32.totalorder %s99, %s100
      %p111 = scmp.eq.s32.totalorder %s32, 0
      %p112 = por %p110, %p111
      %p113 = scmp.ne.s32.totalorder %s99, %s100
      %p114 = scmp.eq.s32.totalorder %s33, 1
      %p115 = por %p113, %p114
      %p117 = scmp.ne.s32.totalorder %s100, %s116
      %p118 = scmp.eq.s32.totalorder %s33, 0
      %p119 = por %p117, %p118
      %s120 = ssub.s32 %s34, %s46
      %s121 = ssub.s32 %s35, %s42
      %s122 = sor.u32 %s120, %s121
      %p123 = scmp.eq.s32.totalorder %s122, 0
      %s125 = sadd.s32 %s124, 1
      %s126 = scalar_select %p123, %s124, %s125
      %p129 = pneg %p123
      %p130 = scmp.eq.s32.totalorder %s27, 1
      %p131 = por %p129, %p130
      %p132 = scmp.ne.s32.totalorder %s124, %s127
      %p133 = scmp.eq.s32.totalorder %s27, 0
      %p134 = por %p132, %p133
      %p135 = scmp.ne.s32.totalorder %s124, %s127
      %p136 = scmp.eq.s32.totalorder %s32, 1
      %p137 = por %p135, %p136
      %p138 = scmp.ne.s32.totalorder %s127, %s128
      %p139 = scmp.eq.s32.totalorder %s32, 0
      %p140 = por %p138, %p139
      %p141 = scmp.ne.s32.totalorder %s127, %s128
      %p142 = scmp.eq.s32.totalorder %s33, 1
      %p143 = por %p141, %p142
      %p145 = scmp.ne.s32.totalorder %s128, %s144
      %p146 = scmp.eq.s32.totalorder %s33, 0
      %p147 = por %p145, %p146
      %s148 = ssub.s32 %s34, %s46
      %s149 = ssub.s32 %s35, %s42
      %s150 = sor.u32 %s148, %s149
      %p151 = scmp.eq.s32.totalorder %s150, 0
      %s153 = sadd.s32 %s152, 1
      %s154 = scalar_select %p151, %s152, %s153
      %p157 = pneg %p151
      %p158 = scmp.eq.s32.totalorder %s27, 1
      %p159 = por %p157, %p158
      %p160 = scmp.ne.s32.totalorder %s152, %s155
      %p161 = scmp.eq.s32.totalorder %s27, 0
      %p162 = por %p160, %p161
      %p163 = scmp.ne.s32.totalorder %s152, %s155
      %p164 = scmp.eq.s32.totalorder %s32, 1
      %p165 = por %p163, %p164
      %p166 = scmp.ne.s32.totalorder %s155, %s156
      %p167 = scmp.eq.s32.totalorder %s32, 0
      %p168 = por %p166, %p167
      %p169 = scmp.ne.s32.totalorder %s155, %s156
      %p170 = scmp.eq.s32.totalorder %s33, 1
      %p171 = por %p169, %p170
      %p173 = scmp.ne.s32.totalorder %s156, %s172
      %p174 = scmp.eq.s32.totalorder %s33, 0
      %p175 = por %p173, %p174
      %s176 = ssub.s32 %s34, %s46
      %s177 = ssub.s32 %s35, %s42
      %s178 = sor.u32 %s176, %s177
      %p179 = scmp.eq.s32.totalorder %s178, 0
      %s181 = sadd.s32 %s180, 1
      %s182 = scalar_select %p179, %s180, %s181
      %p185 = pneg %p179
      %p186 = scmp.eq.s32.totalorder %s27, 1
      %p187 = por %p185, %p186
      %p188 = scmp.ne.s32.totalorder %s180, %s183
      %p189 = scmp.eq.s32.totalorder %s27, 0
      %p190 = por %p188, %p189
      %p191 = scmp.ne.s32.totalorder %s180, %s183
      %p192 = scmp.eq.s32.totalorder %s32, 1
      %p193 = por %p191, %p192
      %p194 = scmp.ne.s32.totalorder %s183, %s184
      %p195 = scmp.eq.s32.totalorder %s32, 0
      %p196 = por %p194, %p195
      %p197 = scmp.ne.s32.totalorder %s183, %s184
      %p198 = scmp.eq.s32.totalorder %s33, 1
      %p199 = por %p197, %p198
      %p201 = scmp.ne.s32.totalorder %s184, %s200
      %p202 = scmp.eq.s32.totalorder %s33, 0
      %p203 = por %p201, %p202
      %s204 = ssub.s32 %s34, %s46
      %s205 = ssub.s32 %s35, %s42
      %s206 = sor.u32 %s204, %s205
      %p207 = scmp.eq.s32.totalorder %s206, 0
      %s209 = sadd.s32 %s208, 1
      %s210 = scalar_select %p207, %s208, %s209
      %p213 = pneg %p207
      %p214 = scmp.eq.s32.totalorder %s27, 1
      %p215 = por %p213, %p214
      %p216 = scmp.ne.s32.totalorder %s208, %s211
      %p217 = scmp.eq.s32.totalorder %s27, 0
      %p218 = por %p216, %p217
      %p219 = scmp.ne.s32.totalorder %s208, %s211
      %p220 = scmp.eq.s32.totalorder %s32, 1
      %p221 = por %p219, %p220
      %p222 = scmp.ne.s32.totalorder %s211, %s212
      %p223 = scmp.eq.s32.totalorder %s32, 0
      %p224 = por %p222, %p223
      %p225 = scmp.ne.s32.totalorder %s211, %s212
      %p226 = scmp.eq.s32.totalorder %s33, 1
      %p227 = por %p225, %p226
      %p229 = scmp.ne.s32.totalorder %s212, %s228
      %p230 = scmp.eq.s32.totalorder %s33, 0
      %p231 = por %p229, %p230
      %s232 = ssub.s32 %s34, %s46
      %s233 = ssub.s32 %s35, %s42
      %s234 = sor.u32 %s232, %s233
      %p235 = scmp.eq.s32.totalorder %s234, 0
      %s237 = sadd.s32 %s236, 1
      %s238 = scalar_select %p235, %s236, %s237
      %p241 = pneg %p235
      %p242 = scmp.eq.s32.totalorder %s27, 1
      %p243 = por %p241, %p242
      %p244 = scmp.ne.s32.totalorder %s236, %s239
      %p245 = scmp.eq.s32.totalorder %s27, 0
      %p246 = por %p244, %p245
      %p247 = scmp.ne.s32.totalorder %s236, %s239
      %p248 = scmp.eq.s32.totalorder %s32, 1
      %p249 = por %p247, %p248
      %p250 = scmp.ne.s32.totalorder %s239, %s240
      %p251 = scmp.eq.s32.totalorder %s32, 0
      %p252 = por %p250, %p251
      %p253 = scmp.ne.s32.totalorder %s239, %s240
      %p254 = scmp.eq.s32.totalorder %s33, 1
      %p255 = por %p253, %p254
      %p257 = scmp.ne.s32.totalorder %s240, %s256
      %p258 = scmp.eq.s32.totalorder %s33, 0
      %p259 = por %p257, %p258
      %p260 = scmp.le.s32.totalorder 1, %s27
      %p261 = scmp.lt.s32.totalorder %s27, 3
      %p262 = pnand %p260, %p261
      %p263 = pneg %p262
      // Predicated region
      $region9: #{tpu_custom_call.1} parent=5 // pred_check
        _
      $region10: #{tpu_custom_call.1} parent=5 // pred_check_branch
        %265 = sbr.rel (%p262) target = $region12
      $region11: #{tpu_custom_call.1} parent=5 // pred_region
        %s266 = ssub.s32 %s27, 1
        // Predicated region
        $region13: #{tpu_custom_call.1} parent=11 // pred_check
          %p267 = pneg %p60
        $region14: #{tpu_custom_call.1} parent=11 // pred_check_branch
          %269 = sbr.rel (%p267) target = $region16
        $region15: #{tpu_custom_call.1} parent=11 // pred_region
          _
        $region16: #{tpu_custom_call.1} parent=11 // pred_fallthru
          _
      $region12: #{tpu_custom_call.1} parent=5 // pred_fallthru
        _
      %p270 = scmp.lt.s32.totalorder %s27, 2
      // Predicated region
      $region17: #{tpu_custom_call.1} parent=5 // pred_check
        %p271 = pneg %p270
      $region18: #{tpu_custom_call.1} parent=5 // pred_check_branch
        %273 = sbr.rel (%p271) target = $region20
      $region19: #{tpu_custom_call.1} parent=5 // pred_region
        // Predicated region
        $region21: #{tpu_custom_call.1} parent=19 // pred_check
          %p274 = pneg %p80
        $region22: #{tpu_custom_call.1} parent=19 // pred_check_branch
          %276 = sbr.rel (%p274) target = $region24
        $region23: #{tpu_custom_call.1} parent=19 // pred_region
          %p277 = scmp.lt.s32.totalorder %s34, 1
          %s278 = scalar_select %p277, %s34, 1
          %s279 = scalar_lea.vmem %s1, %s278
        $region24: #{tpu_custom_call.1} parent=19 // pred_fallthru
          _
        // Predicated region
        $region25: #{tpu_custom_call.1} parent=19 // pred_check
          %p280 = pneg %p106
        $region26: #{tpu_custom_call.1} parent=19 // pred_check_branch
          %282 = sbr.rel (%p280) target = $region28
        $region27: #{tpu_custom_call.1} parent=19 // pred_region
          %s283 = sand.u32 %s96, 1
          %s284 = scalar_lea.sflag [#allocation4], %s283
          %s285 = sand.u32 %s96, 1
          %s286 = scalar_lea.vmem [#allocation3], %s285
          %288 = vsyncadd %s284, 0
          %s289 = scalar_lea.hbm %s2, %s34
          %s291 = sshll.u32 %s289, 4
          %s292 = int_to_ptr.hbm [resolvable:$true] %s291
          %s293 = sshll.u32 %s286, 4
          %s294 = int_to_ptr.vmem [resolvable:$true] %s293
          %296 = dma.hbm_to_vmem [thread:$0]  %s292, 16, %s294, %s284
        $region28: #{tpu_custom_call.1} parent=19 // pred_fallthru
          _
        // Predicated region
        $region29: #{tpu_custom_call.1} parent=19 // pred_check
          %p297 = pneg %p134
        $region30: #{tpu_custom_call.1} parent=19 // pred_check_branch
          %299 = sbr.rel (%p297) target = $region32
        $region31: #{tpu_custom_call.1} parent=19 // pred_region
          %s300 = sand.u32 %s27, 1
          %s301 = scalar_lea.sflag [#allocation7], %s300
          %s302 = sand.u32 %s124, 1
          %s303 = smul.addr %s302, 64
          %s304 = scalar_lea.vmem [#allocation6], %s303
          %s305 = smul.u32 2, %s35
          %307 = vsyncadd %s301, 0
          %s308 = smul.addr %s34, 8
          %s309 = sadd.s32 %s305, %s308
          %s310 = smul.addr %s309, 8
          %s311 = scalar_lea.hbm %s3, %s310
          %s312 = sshll.u32 %s311, 4
          %s313 = int_to_ptr.hbm [resolvable:$true] %s312
          %s314 = sshll.u32 %s304, 4
          %s315 = int_to_ptr.vmem [resolvable:$true] %s314
          %320 = dma.hbm_to_vmem [thread:$0]  %s313, 1024, %s315, %s301, 256, 256, 16
        $region32: #{tpu_custom_call.1} parent=19 // pred_fallthru
          _
        // Predicated region
        $region33: #{tpu_custom_call.1} parent=19 // pred_check
          %p321 = pneg %p162
        $region34: #{tpu_custom_call.1} parent=19 // pred_check_branch
          %323 = sbr.rel (%p321) target = $region36
        $region35: #{tpu_custom_call.1} parent=19 // pred_region
          %s324 = sand.u32 %s27, 1
          %s325 = scalar_lea.sflag [#allocation7], %s324
          %s326 = sand.u32 %s152, 1
          %s327 = smul.addr %s326, 64
          %s328 = scalar_lea.vmem [#allocation8], %s327
          %s329 = smul.u32 2, %s35
          %331 = vsyncadd %s325, 0
          %s332 = smul.addr %s34, 8
          %s333 = sadd.s32 %s329, %s332
          %s334 = smul.addr %s333, 8
          %s335 = scalar_lea.hbm %s4, %s334
          %s336 = sshll.u32 %s335, 4
          %s337 = int_to_ptr.hbm [resolvable:$true] %s336
          %s338 = sshll.u32 %s328, 4
          %s339 = int_to_ptr.vmem [resolvable:$true] %s338
          %344 = dma.hbm_to_vmem [thread:$0]  %s337, 1024, %s339, %s325, 256, 256, 16
        $region36: #{tpu_custom_call.1} parent=19 // pred_fallthru
          _
      $region20: #{tpu_custom_call.1} parent=5 // pred_fallthru
        _
      %p345 = scmp.le.s32.totalorder 1, %s27
      %p346 = scmp.lt.s32.totalorder %s27, 3
      %p347 = pnand %p345, %p346
      %p348 = pneg %p347
      // Predicated region
      $region37: #{tpu_custom_call.1} parent=5 // pred_check
        _
      $region38: #{tpu_custom_call.1} parent=5 // pred_check_branch
        %350 = sbr.rel (%p347) target = $region40
      $region39: #{tpu_custom_call.1} parent=5 // pred_region
        %s351 = ssub.s32 %s27, 1
        %s352 = sand.u32 %s99, 1
        %s353 = scalar_lea.sflag [#allocation4], %s352
        %s354 = sand.u32 %s99, 1
        %s355 = scalar_lea.vmem [#allocation3], %s354
        // Predicated region
        $region41: #{tpu_custom_call.1} parent=39 // pred_check
          %p356 = pneg %p112
        $region42: #{tpu_custom_call.1} parent=39 // pred_check_branch
          %358 = sbr.rel (%p356) target = $region44
        $region43: #{tpu_custom_call.1} parent=39 // pred_region
          %360 = dma.done %s353, 16
        $region44: #{tpu_custom_call.1} parent=39 // pred_fallthru
          _
        %s361 = sand.u32 %s32, 1
        %s362 = scalar_lea.sflag [#allocation7], %s361
        %s363 = sand.u32 %s127, 1
        %s364 = smul.addr %s363, 64
        %s365 = scalar_lea.vmem [#allocation6], %s364
        // Predicated region
        $region45: #{tpu_custom_call.1} parent=39 // pred_check
          %p366 = pneg %p140
        $region46: #{tpu_custom_call.1} parent=39 // pred_check_branch
          %368 = sbr.rel (%p366) target = $region48
        $region47: #{tpu_custom_call.1} parent=39 // pred_region
          %370 = dma.done %s362, 1024
        $region48: #{tpu_custom_call.1} parent=39 // pred_fallthru
          _
        %s371 = sand.u32 %s32, 1
        %s372 = scalar_lea.sflag [#allocation7], %s371
        %s373 = sand.u32 %s155, 1
        %s374 = smul.addr %s373, 64
        %s375 = scalar_lea.vmem [#allocation8], %s374
        // Predicated region
        $region49: #{tpu_custom_call.1} parent=39 // pred_check
          %p376 = pneg %p168
        $region50: #{tpu_custom_call.1} parent=39 // pred_check_branch
          %378 = sbr.rel (%p376) target = $region52
        $region51: #{tpu_custom_call.1} parent=39 // pred_region
          %380 = dma.done %s372, 1024
        $region52: #{tpu_custom_call.1} parent=39 // pred_fallthru
          _
        %p381 = pneg %p60
        %p382 = pneg %p57
        %p383 = scmp.lt.s32.totalorder %s36, 1
        %s384 = scalar_select %p383, %s36, 1
        %s385 = scalar_lea.vmem %s1, %s384
        %p386 = pneg %p86
        %p387 = pneg %p83
        %s388 = sand.u32 %s99, 1
        %s389 = scalar_lea.sflag [#allocation4], %s388
        %s390 = sand.u32 %s99, 1
        %s391 = scalar_lea.vmem [#allocation3], %s390
        %p392 = pneg %p112
        %p393 = pneg %p109
        %s394 = sand.u32 %s32, 1
        %s395 = scalar_lea.sflag [#allocation7], %s394
        %s396 = sand.u32 %s127, 1
        %s397 = smul.addr %s396, 64
        %s398 = scalar_lea.vmem [#allocation6], %s397
        %p399 = pneg %p140
        %p400 = pneg %p137
        %s401 = sand.u32 %s32, 1
        %s402 = scalar_lea.sflag [#allocation7], %s401
        %s403 = sand.u32 %s155, 1
        %s404 = smul.addr %s403, 64
        %s405 = scalar_lea.vmem [#allocation8], %s404
        %p406 = pneg %p168
        %p407 = pneg %p165
        %p408 = pneg %p196
        %p409 = pneg %p193
        %s410 = sand.u32 %s183, 1
        %s411 = scalar_lea.sflag [#allocation5], %s410
        %s412 = sand.u32 %s183, 1
        %s413 = smul.addr %s412, 64
        %s414 = scalar_lea.vmem [#allocation9], %s413
        %p415 = pneg %p224
        %p416 = pneg %p221
        %s417 = sand.u32 %s32, 1
        %s418 = scalar_lea.sflag [#allocation11], %s417
        %s419 = sand.u32 %s211, 1
        %s420 = smul.addr %s419, 64
        %s421 = scalar_lea.vmem [#allocation10], %s420
        %p422 = pneg %p252
        %p423 = pneg %p249
        %s424 = sand.u32 %s32, 1
        %s425 = scalar_lea.sflag [#allocation11], %s424
        %s426 = sand.u32 %s239, 1
        %s427 = smul.addr %s426, 64
        %s428 = scalar_lea.vmem [#allocation12], %s427
        %p429 = scmp.lt.s32.totalorder %s36, 1
        %s430 = scalar_select %p429, %s36, 1
        %s431 = scalar_lea.vmem %s1, %s430
        %s432 = smul.u32 2, %s37
        %s433 = smul.u32 2, %s37
        %s434 = smul.u32 2, %s37
        %s435 = smul.u32 2, %s37
        %s436 = smul.u32 2, %s37
        %v437 = vld [vmem:[%s365] sm:$0xff]
        %v438 = vld [vmem:[%s365 + $0x8] sm:$0xff]
        %v439 = vld [vmem:[%s365 + $0x10] sm:$0xff]
        %v440 = vld [vmem:[%s365 + $0x18] sm:$0xff]
        %v441 = vld [vmem:[%s365 + $0x20] sm:$0xff]
        %v442 = vld [vmem:[%s365 + $0x28] sm:$0xff]
        %v443 = vld [vmem:[%s365 + $0x30] sm:$0xff]
        %v444 = vld [vmem:[%s365 + $0x38] sm:$0xff]
        %v445 = vld [vmem:[%s375] sm:$0xff]
        %v446 = vld [vmem:[%s375 + $0x8] sm:$0xff]
        %v447 = vld [vmem:[%s375 + $0x10] sm:$0xff]
        %v448 = vld [vmem:[%s375 + $0x18] sm:$0xff]
        %v449 = vld [vmem:[%s375 + $0x20] sm:$0xff]
        %v450 = vld [vmem:[%s375 + $0x28] sm:$0xff]
        %v451 = vld [vmem:[%s375 + $0x30] sm:$0xff]
        %v452 = vld [vmem:[%s375 + $0x38] sm:$0xff]
        %v453 = vld [vmem:[%s431] sm:$0x1]
        %v454 = vld [vmem:[%s355] sm:$0x1]
        %vm455 = vcmask 261120
        %v457 = vsel %vm455, %v454, 0
        %459 = vmatpush.msra.mxu0 0.0
        %460 = vmatpush.msra.mxu0 0.0
        %461 = vmatpush.msra.mxu0 0.0
        %462 = vmatpush.msra.mxu0 0.0
        %463 = vmatpush.msra.mxu0 0.0
        %464 = vmatpush.msra.mxu0 0.0
        %465 = vmatpush.msra.mxu0 0.0
        %466 = vmatpush.msra.mxu0 0.0
        %467 = vmatpush.msra.mxu0 0.0
        %468 = vmatpush.msra.mxu0 0.0
        %469 = vmatpush.msra.mxu0 0.0
        %470 = vmatpush.msra.mxu0 0.0
        %v471 = vand.u32 %v451, 4294901760
        %472 = vmatpush.msra.mxu0 %v471
        %v473 = vand.u32 %v449, 4294901760
        %474 = vmatpush.msra.mxu0 %v473
        %v475 = vand.u32 %v447, 4294901760
        %476 = vmatpush.msra.mxu0 %v475
        %v477 = vand.u32 %v445, 4294901760
        %478 = vmatpush.msra.mxu0 %v477
        %v479 = vand.u32 %v457, 4294901760
        %v480 = vsub.f32 %v457, %v479
        %v481 = vand.u32 %v480, 4294901760
        %v482 = vsub.f32 %v480, %v481
        %v483 = vand.u32 %v482, 4294901760
        %484 = vmatmul.f32.gmra.mxu0 %v483
        %v485 = vpop.f32.mrf.mxu0
        %v486 = vadd.f32 0.0, %v485
        %487 = vdwg.mxu0
        %488 = vmatpush.msra.mxu0 0.0
        %489 = vmatpush.msra.mxu0 0.0
        %490 = vmatpush.msra.mxu0 0.0
        %491 = vmatpush.msra.mxu0 0.0
        %492 = vmatpush.msra.mxu0 0.0
        %493 = vmatpush.msra.mxu0 0.0
        %494 = vmatpush.msra.mxu0 0.0
        %495 = vmatpush.msra.mxu0 0.0
        %496 = vmatpush.msra.mxu0 0.0
        %497 = vmatpush.msra.mxu0 0.0
        %498 = vmatpush.msra.mxu0 0.0
        %499 = vmatpush.msra.mxu0 0.0
        %v500 = vand.u32 %v451, 4294901760
        %v501 = vsub.f32 %v451, %v500
        %v502 = vand.u32 %v501, 4294901760
        %v503 = vsub.f32 %v501, %v502
        %v504 = vand.u32 %v503, 4294901760
        %505 = vmatpush.msra.mxu0 %v504
        %v506 = vand.u32 %v449, 4294901760
        %v507 = vsub.f32 %v449, %v506
        %v508 = vand.u32 %v507, 4294901760
        %v509 = vsub.f32 %v507, %v508
        %v510 = vand.u32 %v509, 4294901760
        %511 = vmatpush.msra.mxu0 %v510
        %v512 = vand.u32 %v447, 4294901760
        %v513 = vsub.f32 %v447, %v512
        %v514 = vand.u32 %v513, 4294901760
        %v515 = vsub.f32 %v513, %v514
        %v516 = vand.u32 %v515, 4294901760
        %517 = vmatpush.msra.mxu0 %v516
        %v518 = vand.u32 %v445, 4294901760
        %v519 = vsub.f32 %v445, %v518
        %v520 = vand.u32 %v519, 4294901760
        %v521 = vsub.f32 %v519, %v520
        %v522 = vand.u32 %v521, 4294901760
        %523 = vmatpush.msra.mxu0 %v522
        %v524 = vand.u32 %v457, 4294901760
        %525 = vmatmul.f32.gmra.mxu0 %v524
        %v526 = vpop.f32.mrf.mxu0
        %v527 = vadd.f32 %v486, %v526
        %528 = vdwg.mxu0
        %529 = vmatpush.msra.mxu0 0.0
        %530 = vmatpush.msra.mxu0 0.0
        %531 = vmatpush.msra.mxu0 0.0
        %532 = vmatpush.msra.mxu0 0.0
        %533 = vmatpush.msra.mxu0 0.0
        %534 = vmatpush.msra.mxu0 0.0
        %535 = vmatpush.msra.mxu0 0.0
        %536 = vmatpush.msra.mxu0 0.0
        %537 = vmatpush.msra.mxu0 0.0
        %538 = vmatpush.msra.mxu0 0.0
        %539 = vmatpush.msra.mxu0 0.0
        %540 = vmatpush.msra.mxu0 0.0
        %v541 = vand.u32 %v451, 4294901760
        %v542 = vsub.f32 %v451, %v541
        %543 = vmatpush.msra.mxu0 %v542
        %v544 = vand.u32 %v449, 4294901760
        %v545 = vsub.f32 %v449, %v544
        %546 = vmatpush.msra.mxu0 %v545
        %v547 = vand.u32 %v447, 4294901760
        %v548 = vsub.f32 %v447, %v547
        %549 = vmatpush.msra.mxu0 %v548
        %v550 = vand.u32 %v445, 4294901760
        %v551 = vsub.f32 %v445, %v550
        %552 = vmatpush.msra.mxu0 %v551
        %v553 = vand.u32 %v457, 4294901760
        %v554 = vsub.f32 %v457, %v553
        %555 = vmatmul.f32.gmra.mxu0 %v554
        %v556 = vpop.f32.mrf.mxu0
        %v557 = vadd.f32 %v527, %v556
        %558 = vdwg.mxu0
        %559 = vmatpush.msra.mxu0 0.0
        %560 = vmatpush.msra.mxu0 0.0
        %561 = vmatpush.msra.mxu0 0.0
        %562 = vmatpush.msra.mxu0 0.0
        %563 = vmatpush.msra.mxu0 0.0
        %564 = vmatpush.msra.mxu0 0.0
        %565 = vmatpush.msra.mxu0 0.0
        %566 = vmatpush.msra.mxu0 0.0
        %567 = vmatpush.msra.mxu0 0.0
        %568 = vmatpush.msra.mxu0 0.0
        %569 = vmatpush.msra.mxu0 0.0
        %570 = vmatpush.msra.mxu0 0.0
        %v571 = vand.u32 %v451, 4294901760
        %572 = vmatpush.msra.mxu0 %v571
        %v573 = vand.u32 %v449, 4294901760
        %574 = vmatpush.msra.mxu0 %v573
        %v575 = vand.u32 %v447, 4294901760
        %576 = vmatpush.msra.mxu0 %v575
        %v577 = vand.u32 %v445, 4294901760
        %578 = vmatpush.msra.mxu0 %v577
        %v579 = vand.u32 %v457, 4294901760
        %v580 = vsub.f32 %v457, %v579
        %v581 = vand.u32 %v580, 4294901760
        %582 = vmatmul.f32.gmra.mxu0 %v581
        %v583 = vpop.f32.mrf.mxu0
        %v584 = vadd.f32 %v557, %v583
        %585 = vdwg.mxu0
        %586 = vmatpush.msra.mxu0 0.0
        %587 = vmatpush.msra.mxu0 0.0
        %588 = vmatpush.msra.mxu0 0.0
        %589 = vmatpush.msra.mxu0 0.0
        %590 = vmatpush.msra.mxu0 0.0
        %591 = vmatpush.msra.mxu0 0.0
        %592 = vmatpush.msra.mxu0 0.0
        %593 = vmatpush.msra.mxu0 0.0
        %594 = vmatpush.msra.mxu0 0.0
        %595 = vmatpush.msra.mxu0 0.0
        %596 = vmatpush.msra.mxu0 0.0
        %597 = vmatpush.msra.mxu0 0.0
        %v598 = vand.u32 %v451, 4294901760
        %v599 = vsub.f32 %v451, %v598
        %v600 = vand.u32 %v599, 4294901760
        %601 = vmatpush.msra.mxu0 %v600
        %v602 = vand.u32 %v449, 4294901760
        %v603 = vsub.f32 %v449, %v602
        %v604 = vand.u32 %v603, 4294901760
        %605 = vmatpush.msra.mxu0 %v604
        %v606 = vand.u32 %v447, 4294901760
        %v607 = vsub.f32 %v447, %v606
        %v608 = vand.u32 %v607, 4294901760
        %609 = vmatpush.msra.mxu0 %v608
        %v610 = vand.u32 %v445, 4294901760
        %v611 = vsub.f32 %v445, %v610
        %v612 = vand.u32 %v611, 4294901760
        %613 = vmatpush.msra.mxu0 %v612
        %v614 = vand.u32 %v457, 4294901760
        %615 = vmatmul.f32.gmra.mxu0 %v614
        %v616 = vpop.f32.mrf.mxu0
        %v617 = vadd.f32 %v584, %v616
        %618 = vdwg.mxu0
        %619 = vmatpush.msra.mxu0 0.0
        %620 = vmatpush.msra.mxu0 0.0
        %621 = vmatpush.msra.mxu0 0.0
        %622 = vmatpush.msra.mxu0 0.0
        %623 = vmatpush.msra.mxu0 0.0
        %624 = vmatpush.msra.mxu0 0.0
        %625 = vmatpush.msra.mxu0 0.0
        %626 = vmatpush.msra.mxu0 0.0
        %627 = vmatpush.msra.mxu0 0.0
        %628 = vmatpush.msra.mxu0 0.0
        %629 = vmatpush.msra.mxu0 0.0
        %630 = vmatpush.msra.mxu0 0.0
        %v631 = vand.u32 %v451, 4294901760
        %632 = vmatpush.msra.mxu0 %v631
        %v633 = vand.u32 %v449, 4294901760
        %634 = vmatpush.msra.mxu0 %v633
        %v635 = vand.u32 %v447, 4294901760
        %636 = vmatpush.msra.mxu0 %v635
        %v637 = vand.u32 %v445, 4294901760
        %638 = vmatpush.msra.mxu0 %v637
        %v639 = vand.u32 %v457, 4294901760
        %640 = vmatmul.f32.gmra.mxu0 %v639
        %v641 = vpop.f32.mrf.mxu0
        %v642 = vadd.f32 %v617, %v641
        %643 = vdwg.mxu0
        %644 = vmatpush.msra.mxu0 0.0
        %645 = vmatpush.msra.mxu0 0.0
        %646 = vmatpush.msra.mxu0 0.0
        %647 = vmatpush.msra.mxu0 0.0
        %648 = vmatpush.msra.mxu0 0.0
        %649 = vmatpush.msra.mxu0 0.0
        %650 = vmatpush.msra.mxu0 0.0
        %651 = vmatpush.msra.mxu0 0.0
        %652 = vmatpush.msra.mxu0 0.0
        %653 = vmatpush.msra.mxu0 0.0
        %654 = vmatpush.msra.mxu0 0.0
        %655 = vmatpush.msra.mxu0 0.0
        %v656 = vand.u32 %v452, 4294901760
        %657 = vmatpush.msra.mxu0 %v656
        %v658 = vand.u32 %v450, 4294901760
        %659 = vmatpush.msra.mxu0 %v658
        %v660 = vand.u32 %v448, 4294901760
        %661 = vmatpush.msra.mxu0 %v660
        %v662 = vand.u32 %v446, 4294901760
        %663 = vmatpush.msra.mxu0 %v662
        %v664 = vand.u32 %v457, 4294901760
        %v665 = vsub.f32 %v457, %v664
        %v666 = vand.u32 %v665, 4294901760
        %v667 = vsub.f32 %v665, %v666
        %v668 = vand.u32 %v667, 4294901760
        %669 = vmatmul.f32.gmra.mxu0 %v668
        %v670 = vpop.f32.mrf.mxu0
        %v671 = vadd.f32 0.0, %v670
        %672 = vdwg.mxu0
        %673 = vmatpush.msra.mxu0 0.0
        %674 = vmatpush.msra.mxu0 0.0
        %675 = vmatpush.msra.mxu0 0.0
        %676 = vmatpush.msra.mxu0 0.0
        %677 = vmatpush.msra.mxu0 0.0
        %678 = vmatpush.msra.mxu0 0.0
        %679 = vmatpush.msra.mxu0 0.0
        %680 = vmatpush.msra.mxu0 0.0
        %681 = vmatpush.msra.mxu0 0.0
        %682 = vmatpush.msra.mxu0 0.0
        %683 = vmatpush.msra.mxu0 0.0
        %684 = vmatpush.msra.mxu0 0.0
        %v685 = vand.u32 %v452, 4294901760
        %v686 = vsub.f32 %v452, %v685
        %v687 = vand.u32 %v686, 4294901760
        %v688 = vsub.f32 %v686, %v687
        %v689 = vand.u32 %v688, 4294901760
        %690 = vmatpush.msra.mxu0 %v689
        %v691 = vand.u32 %v450, 4294901760
        %v692 = vsub.f32 %v450, %v691
        %v693 = vand.u32 %v692, 4294901760
        %v694 = vsub.f32 %v692, %v693
        %v695 = vand.u32 %v694, 4294901760
        %696 = vmatpush.msra.mxu0 %v695
        %v697 = vand.u32 %v448, 4294901760
        %v698 = vsub.f32 %v448, %v697
        %v699 = vand.u32 %v698, 4294901760
        %v700 = vsub.f32 %v698, %v699
        %v701 = vand.u32 %v700, 4294901760
        %702 = vmatpush.msra.mxu0 %v701
        %v703 = vand.u32 %v446, 4294901760
        %v704 = vsub.f32 %v446, %v703
        %v705 = vand.u32 %v704, 4294901760
        %v706 = vsub.f32 %v704, %v705
        %v707 = vand.u32 %v706, 4294901760
        %708 = vmatpush.msra.mxu0 %v707
        %v709 = vand.u32 %v457, 4294901760
        %710 = vmatmul.f32.gmra.mxu0 %v709
        %v711 = vpop.f32.mrf.mxu0
        %v712 = vadd.f32 %v671, %v711
        %713 = vdwg.mxu0
        %714 = vmatpush.msra.mxu0 0.0
        %715 = vmatpush.msra.mxu0 0.0
        %716 = vmatpush.msra.mxu0 0.0
        %717 = vmatpush.msra.mxu0 0.0
        %718 = vmatpush.msra.mxu0 0.0
        %719 = vmatpush.msra.mxu0 0.0
        %720 = vmatpush.msra.mxu0 0.0
        %721 = vmatpush.msra.mxu0 0.0
        %722 = vmatpush.msra.mxu0 0.0
        %723 = vmatpush.msra.mxu0 0.0
        %724 = vmatpush.msra.mxu0 0.0
        %725 = vmatpush.msra.mxu0 0.0
        %v726 = vand.u32 %v452, 4294901760
        %v727 = vsub.f32 %v452, %v726
        %728 = vmatpush.msra.mxu0 %v727
        %v729 = vand.u32 %v450, 4294901760
        %v730 = vsub.f32 %v450, %v729
        %731 = vmatpush.msra.mxu0 %v730
        %v732 = vand.u32 %v448, 4294901760
        %v733 = vsub.f32 %v448, %v732
        %734 = vmatpush.msra.mxu0 %v733
        %v735 = vand.u32 %v446, 4294901760
        %v736 = vsub.f32 %v446, %v735
        %737 = vmatpush.msra.mxu0 %v736
        %v738 = vand.u32 %v457, 4294901760
        %v739 = vsub.f32 %v457, %v738
        %740 = vmatmul.f32.gmra.mxu0 %v739
        %v741 = vpop.f32.mrf.mxu0
        %v742 = vadd.f32 %v712, %v741
        %743 = vdwg.mxu0
        %744 = vmatpush.msra.mxu0 0.0
        %745 = vmatpush.msra.mxu0 0.0
        %746 = vmatpush.msra.mxu0 0.0
        %747 = vmatpush.msra.mxu0 0.0
        %748 = vmatpush.msra.mxu0 0.0
        %749 = vmatpush.msra.mxu0 0.0
        %750 = vmatpush.msra.mxu0 0.0
        %751 = vmatpush.msra.mxu0 0.0
        %752 = vmatpush.msra.mxu0 0.0
        %753 = vmatpush.msra.mxu0 0.0
        %754 = vmatpush.msra.mxu0 0.0
        %755 = vmatpush.msra.mxu0 0.0
        %v756 = vand.u32 %v452, 4294901760
        %757 = vmatpush.msra.mxu0 %v756
        %v758 = vand.u32 %v450, 4294901760
        %759 = vmatpush.msra.mxu0 %v758
        %v760 = vand.u32 %v448, 4294901760
        %761 = vmatpush.msra.mxu0 %v760
        %v762 = vand.u32 %v446, 4294901760
        %763 = vmatpush.msra.mxu0 %v762
        %v764 = vand.u32 %v457, 4294901760
        %v765 = vsub.f32 %v457, %v764
        %v766 = vand.u32 %v765, 4294901760
        %767 = vmatmul.f32.gmra.mxu0 %v766
        %v768 = vpop.f32.mrf.mxu0
        %v769 = vadd.f32 %v742, %v768
        %770 = vdwg.mxu0
        %771 = vmatpush.msra.mxu0 0.0
        %772 = vmatpush.msra.mxu0 0.0
        %773 = vmatpush.msra.mxu0 0.0
        %774 = vmatpush.msra.mxu0 0.0
        %775 = vmatpush.msra.mxu0 0.0
        %776 = vmatpush.msra.mxu0 0.0
        %777 = vmatpush.msra.mxu0 0.0
        %778 = vmatpush.msra.mxu0 0.0
        %779 = vmatpush.msra.mxu0 0.0
        %780 = vmatpush.msra.mxu0 0.0
        %781 = vmatpush.msra.mxu0 0.0
        %782 = vmatpush.msra.mxu0 0.0
        %v783 = vand.u32 %v452, 4294901760
        %v784 = vsub.f32 %v452, %v783
        %v785 = vand.u32 %v784, 4294901760
        %786 = vmatpush.msra.mxu0 %v785
        %v787 = vand.u32 %v450, 4294901760
        %v788 = vsub.f32 %v450, %v787
        %v789 = vand.u32 %v788, 4294901760
        %790 = vmatpush.msra.mxu0 %v789
        %v791 = vand.u32 %v448, 4294901760
        %v792 = vsub.f32 %v448, %v791
        %v793 = vand.u32 %v792, 4294901760
        %794 = vmatpush.msra.mxu0 %v793
        %v795 = vand.u32 %v446, 4294901760
        %v796 = vsub.f32 %v446, %v795
        %v797 = vand.u32 %v796, 4294901760
        %798 = vmatpush.msra.mxu0 %v797
        %v799 = vand.u32 %v457, 4294901760
        %800 = vmatmul.f32.gmra.mxu0 %v799
        %v801 = vpop.f32.mrf.mxu0
        %v802 = vadd.f32 %v769, %v801
        %803 = vdwg.mxu0
        %804 = vmatpush.msra.mxu0 0.0
        %805 = vmatpush.msra.mxu0 0.0
        %806 = vmatpush.msra.mxu0 0.0
        %807 = vmatpush.msra.mxu0 0.0
        %808 = vmatpush.msra.mxu0 0.0
        %809 = vmatpush.msra.mxu0 0.0
        %810 = vmatpush.msra.mxu0 0.0
        %811 = vmatpush.msra.mxu0 0.0
        %812 = vmatpush.msra.mxu0 0.0
        %813 = vmatpush.msra.mxu0 0.0
        %814 = vmatpush.msra.mxu0 0.0
        %815 = vmatpush.msra.mxu0 0.0
        %v816 = vand.u32 %v452, 4294901760
        %817 = vmatpush.msra.mxu0 %v816
        %v818 = vand.u32 %v450, 4294901760
        %819 = vmatpush.msra.mxu0 %v818
        %v820 = vand.u32 %v448, 4294901760
        %821 = vmatpush.msra.mxu0 %v820
        %v822 = vand.u32 %v446, 4294901760
        %823 = vmatpush.msra.mxu0 %v822
        %v824 = vand.u32 %v457, 4294901760
        %825 = vmatmul.f32.gmra.mxu0 %v824
        %v826 = vpop.f32.mrf.mxu0
        %v827 = vadd.f32 %v802, %v826
        %828 = vdwg.mxu0
        %v830 = vsel %vm455, %v453, 0
        %832 = vmatpush.msra.mxu0 0.0
        %833 = vmatpush.msra.mxu0 0.0
        %834 = vmatpush.msra.mxu0 0.0
        %835 = vmatpush.msra.mxu0 0.0
        %836 = vmatpush.msra.mxu0 0.0
        %837 = vmatpush.msra.mxu0 0.0
        %838 = vmatpush.msra.mxu0 0.0
        %839 = vmatpush.msra.mxu0 0.0
        %840 = vmatpush.msra.mxu0 0.0
        %841 = vmatpush.msra.mxu0 0.0
        %842 = vmatpush.msra.mxu0 0.0
        %843 = vmatpush.msra.mxu0 0.0
        %v844 = vand.u32 %v443, 4294901760
        %845 = vmatpush.msra.mxu0 %v844
        %v846 = vand.u32 %v441, 4294901760
        %847 = vmatpush.msra.mxu0 %v846
        %v848 = vand.u32 %v439, 4294901760
        %849 = vmatpush.msra.mxu0 %v848
        %v850 = vand.u32 %v437, 4294901760
        %851 = vmatpush.msra.mxu0 %v850
        %v852 = vand.u32 %v830, 4294901760
        %v853 = vsub.f32 %v830, %v852
        %v854 = vand.u32 %v853, 4294901760
        %v855 = vsub.f32 %v853, %v854
        %v856 = vand.u32 %v855, 4294901760
        %857 = vmatmul.f32.gmra.mxu0 %v856
        %v858 = vpop.f32.mrf.mxu0
        %v859 = vadd.f32 %v642, %v858
        %860 = vdwg.mxu0
        %861 = vmatpush.msra.mxu0 0.0
        %862 = vmatpush.msra.mxu0 0.0
        %863 = vmatpush.msra.mxu0 0.0
        %864 = vmatpush.msra.mxu0 0.0
        %865 = vmatpush.msra.mxu0 0.0
        %866 = vmatpush.msra.mxu0 0.0
        %867 = vmatpush.msra.mxu0 0.0
        %868 = vmatpush.msra.mxu0 0.0
        %869 = vmatpush.msra.mxu0 0.0
        %870 = vmatpush.msra.mxu0 0.0
        %871 = vmatpush.msra.mxu0 0.0
        %872 = vmatpush.msra.mxu0 0.0
        %v873 = vand.u32 %v443, 4294901760
        %v874 = vsub.f32 %v443, %v873
        %v875 = vand.u32 %v874, 4294901760
        %v876 = vsub.f32 %v874, %v875
        %v877 = vand.u32 %v876, 4294901760
        %878 = vmatpush.msra.mxu0 %v877
        %v879 = vand.u32 %v441, 4294901760
        %v880 = vsub.f32 %v441, %v879
        %v881 = vand.u32 %v880, 4294901760
        %v882 = vsub.f32 %v880, %v881
        %v883 = vand.u32 %v882, 4294901760
        %884 = vmatpush.msra.mxu0 %v883
        %v885 = vand.u32 %v439, 4294901760
        %v886 = vsub.f32 %v439, %v885
        %v887 = vand.u32 %v886, 4294901760
        %v888 = vsub.f32 %v886, %v887
        %v889 = vand.u32 %v888, 4294901760
        %890 = vmatpush.msra.mxu0 %v889
        %v891 = vand.u32 %v437, 4294901760
        %v892 = vsub.f32 %v437, %v891
        %v893 = vand.u32 %v892, 4294901760
        %v894 = vsub.f32 %v892, %v893
        %v895 = vand.u32 %v894, 4294901760
        %896 = vmatpush.msra.mxu0 %v895
        %v897 = vand.u32 %v830, 4294901760
        %898 = vmatmul.f32.gmra.mxu0 %v897
        %v899 = vpop.f32.mrf.mxu0
        %v900 = vadd.f32 %v859, %v899
        %901 = vdwg.mxu0
        %902 = vmatpush.msra.mxu0 0.0
        %903 = vmatpush.msra.mxu0 0.0
        %904 = vmatpush.msra.mxu0 0.0
        %905 = vmatpush.msra.mxu0 0.0
        %906 = vmatpush.msra.mxu0 0.0
        %907 = vmatpush.msra.mxu0 0.0
        %908 = vmatpush.msra.mxu0 0.0
        %909 = vmatpush.msra.mxu0 0.0
        %910 = vmatpush.msra.mxu0 0.0
        %911 = vmatpush.msra.mxu0 0.0
        %912 = vmatpush.msra.mxu0 0.0
        %913 = vmatpush.msra.mxu0 0.0
        %v914 = vand.u32 %v443, 4294901760
        %v915 = vsub.f32 %v443, %v914
        %916 = vmatpush.msra.mxu0 %v915
        %v917 = vand.u32 %v441, 4294901760
        %v918 = vsub.f32 %v441, %v917
        %919 = vmatpush.msra.mxu0 %v918
        %v920 = vand.u32 %v439, 4294901760
        %v921 = vsub.f32 %v439, %v920
        %922 = vmatpush.msra.mxu0 %v921
        %v923 = vand.u32 %v437, 4294901760
        %v924 = vsub.f32 %v437, %v923
        %925 = vmatpush.msra.mxu0 %v924
        %v926 = vand.u32 %v830, 4294901760
        %v927 = vsub.f32 %v830, %v926
        %928 = vmatmul.f32.gmra.mxu0 %v927
        %v929 = vpop.f32.mrf.mxu0
        %v930 = vadd.f32 %v900, %v929
        %931 = vdwg.mxu0
        %932 = vmatpush.msra.mxu0 0.0
        %933 = vmatpush.msra.mxu0 0.0
        %934 = vmatpush.msra.mxu0 0.0
        %935 = vmatpush.msra.mxu0 0.0
        %936 = vmatpush.msra.mxu0 0.0
        %937 = vmatpush.msra.mxu0 0.0
        %938 = vmatpush.msra.mxu0 0.0
        %939 = vmatpush.msra.mxu0 0.0
        %940 = vmatpush.msra.mxu0 0.0
        %941 = vmatpush.msra.mxu0 0.0
        %942 = vmatpush.msra.mxu0 0.0
        %943 = vmatpush.msra.mxu0 0.0
        %v944 = vand.u32 %v443, 4294901760
        %945 = vmatpush.msra.mxu0 %v944
        %v946 = vand.u32 %v441, 4294901760
        %947 = vmatpush.msra.mxu0 %v946
        %v948 = vand.u32 %v439, 4294901760
        %949 = vmatpush.msra.mxu0 %v948
        %v950 = vand.u32 %v437, 4294901760
        %951 = vmatpush.msra.mxu0 %v950
        %v952 = vand.u32 %v830, 4294901760
        %v953 = vsub.f32 %v830, %v952
        %v954 = vand.u32 %v953, 4294901760
        %955 = vmatmul.f32.gmra.mxu0 %v954
        %v956 = vpop.f32.mrf.mxu0
        %v957 = vadd.f32 %v930, %v956
        %958 = vdwg.mxu0
        %959 = vmatpush.msra.mxu0 0.0
        %960 = vmatpush.msra.mxu0 0.0
        %961 = vmatpush.msra.mxu0 0.0
        %962 = vmatpush.msra.mxu0 0.0
        %963 = vmatpush.msra.mxu0 0.0
        %964 = vmatpush.msra.mxu0 0.0
        %965 = vmatpush.msra.mxu0 0.0
        %966 = vmatpush.msra.mxu0 0.0
        %967 = vmatpush.msra.mxu0 0.0
        %968 = vmatpush.msra.mxu0 0.0
        %969 = vmatpush.msra.mxu0 0.0
        %970 = vmatpush.msra.mxu0 0.0
        %v971 = vand.u32 %v443, 4294901760
        %v972 = vsub.f32 %v443, %v971
        %v973 = vand.u32 %v972, 4294901760
        %974 = vmatpush.msra.mxu0 %v973
        %v975 = vand.u32 %v441, 4294901760
        %v976 = vsub.f32 %v441, %v975
        %v977 = vand.u32 %v976, 4294901760
        %978 = vmatpush.msra.mxu0 %v977
        %v979 = vand.u32 %v439, 4294901760
        %v980 = vsub.f32 %v439, %v979
        %v981 = vand.u32 %v980, 4294901760
        %982 = vmatpush.msra.mxu0 %v981
        %v983 = vand.u32 %v437, 4294901760
        %v984 = vsub.f32 %v437, %v983
        %v985 = vand.u32 %v984, 4294901760
        %986 = vmatpush.msra.mxu0 %v985
        %v987 = vand.u32 %v830, 4294901760
        %988 = vmatmul.f32.gmra.mxu0 %v987
        %v989 = vpop.f32.mrf.mxu0
        %v990 = vadd.f32 %v957, %v989
        %991 = vdwg.mxu0
        %992 = vmatpush.msra.mxu0 0.0
        %993 = vmatpush.msra.mxu0 0.0
        %994 = vmatpush.msra.mxu0 0.0
        %995 = vmatpush.msra.mxu0 0.0
        %996 = vmatpush.msra.mxu0 0.0
        %997 = vmatpush.msra.mxu0 0.0
        %998 = vmatpush.msra.mxu0 0.0
        %999 = vmatpush.msra.mxu0 0.0
        %1000 = vmatpush.msra.mxu0 0.0
        %1001 = vmatpush.msra.mxu0 0.0
        %1002 = vmatpush.msra.mxu0 0.0
        %1003 = vmatpush.msra.mxu0 0.0
        %v1004 = vand.u32 %v443, 4294901760
        %1005 = vmatpush.msra.mxu0 %v1004
        %v1006 = vand.u32 %v441, 4294901760
        %1007 = vmatpush.msra.mxu0 %v1006
        %v1008 = vand.u32 %v439, 4294901760
        %1009 = vmatpush.msra.mxu0 %v1008
        %v1010 = vand.u32 %v437, 4294901760
        %1011 = vmatpush.msra.mxu0 %v1010
        %v1012 = vand.u32 %v830, 4294901760
        %1013 = vmatmul.f32.gmra.mxu0 %v1012
        %v1014 = vpop.f32.mrf.mxu0
        %v1015 = vadd.f32 %v990, %v1014
        %1016 = vdwg.mxu0
        %1017 = vmatpush.msra.mxu0 0.0
        %1018 = vmatpush.msra.mxu0 0.0
        %1019 = vmatpush.msra.mxu0 0.0
        %1020 = vmatpush.msra.mxu0 0.0
        %1021 = vmatpush.msra.mxu0 0.0
        %1022 = vmatpush.msra.mxu0 0.0
        %1023 = vmatpush.msra.mxu0 0.0
        %1024 = vmatpush.msra.mxu0 0.0
        %1025 = vmatpush.msra.mxu0 0.0
        %1026 = vmatpush.msra.mxu0 0.0
        %1027 = vmatpush.msra.mxu0 0.0
        %1028 = vmatpush.msra.mxu0 0.0
        %v1029 = vand.u32 %v444, 4294901760
        %1030 = vmatpush.msra.mxu0 %v1029
        %v1031 = vand.u32 %v442, 4294901760
        %1032 = vmatpush.msra.mxu0 %v1031
        %v1033 = vand.u32 %v440, 4294901760
        %1034 = vmatpush.msra.mxu0 %v1033
        %v1035 = vand.u32 %v438, 4294901760
        %1036 = vmatpush.msra.mxu0 %v1035
        %v1037 = vand.u32 %v830, 4294901760
        %v1038 = vsub.f32 %v830, %v1037
        %v1039 = vand.u32 %v1038, 4294901760
        %v1040 = vsub.f32 %v1038, %v1039
        %v1041 = vand.u32 %v1040, 4294901760
        %1042 = vmatmul.f32.gmra.mxu0 %v1041
        %v1043 = vpop.f32.mrf.mxu0
        %v1044 = vadd.f32 %v827, %v1043
        %1045 = vdwg.mxu0
        %1046 = vmatpush.msra.mxu0 0.0
        %1047 = vmatpush.msra.mxu0 0.0
        %1048 = vmatpush.msra.mxu0 0.0
        %1049 = vmatpush.msra.mxu0 0.0
        %1050 = vmatpush.msra.mxu0 0.0
        %1051 = vmatpush.msra.mxu0 0.0
        %1052 = vmatpush.msra.mxu0 0.0
        %1053 = vmatpush.msra.mxu0 0.0
        %1054 = vmatpush.msra.mxu0 0.0
        %1055 = vmatpush.msra.mxu0 0.0
        %1056 = vmatpush.msra.mxu0 0.0
        %1057 = vmatpush.msra.mxu0 0.0
        %v1058 = vand.u32 %v444, 4294901760
        %v1059 = vsub.f32 %v444, %v1058
        %v1060 = vand.u32 %v1059, 4294901760
        %v1061 = vsub.f32 %v1059, %v1060
        %v1062 = vand.u32 %v1061, 4294901760
        %1063 = vmatpush.msra.mxu0 %v1062
        %v1064 = vand.u32 %v442, 4294901760
        %v1065 = vsub.f32 %v442, %v1064
        %v1066 = vand.u32 %v1065, 4294901760
        %v1067 = vsub.f32 %v1065, %v1066
        %v1068 = vand.u32 %v1067, 4294901760
        %1069 = vmatpush.msra.mxu0 %v1068
        %v1070 = vand.u32 %v440, 4294901760
        %v1071 = vsub.f32 %v440, %v1070
        %v1072 = vand.u32 %v1071, 4294901760
        %v1073 = vsub.f32 %v1071, %v1072
        %v1074 = vand.u32 %v1073, 4294901760
        %1075 = vmatpush.msra.mxu0 %v1074
        %v1076 = vand.u32 %v438, 4294901760
        %v1077 = vsub.f32 %v438, %v1076
        %v1078 = vand.u32 %v1077, 4294901760
        %v1079 = vsub.f32 %v1077, %v1078
        %v1080 = vand.u32 %v1079, 4294901760
        %1081 = vmatpush.msra.mxu0 %v1080
        %v1082 = vand.u32 %v830, 4294901760
        %1083 = vmatmul.f32.gmra.mxu0 %v1082
        %v1084 = vpop.f32.mrf.mxu0
        %v1085 = vadd.f32 %v1044, %v1084
        %1086 = vdwg.mxu0
        %1087 = vmatpush.msra.mxu0 0.0
        %1088 = vmatpush.msra.mxu0 0.0
        %1089 = vmatpush.msra.mxu0 0.0
        %1090 = vmatpush.msra.mxu0 0.0
        %1091 = vmatpush.msra.mxu0 0.0
        %1092 = vmatpush.msra.mxu0 0.0
        %1093 = vmatpush.msra.mxu0 0.0
        %1094 = vmatpush.msra.mxu0 0.0
        %1095 = vmatpush.msra.mxu0 0.0
        %1096 = vmatpush.msra.mxu0 0.0
        %1097 = vmatpush.msra.mxu0 0.0
        %1098 = vmatpush.msra.mxu0 0.0
        %v1099 = vand.u32 %v444, 4294901760
        %v1100 = vsub.f32 %v444, %v1099
        %1101 = vmatpush.msra.mxu0 %v1100
        %v1102 = vand.u32 %v442, 4294901760
        %v1103 = vsub.f32 %v442, %v1102
        %1104 = vmatpush.msra.mxu0 %v1103
        %v1105 = vand.u32 %v440, 4294901760
        %v1106 = vsub.f32 %v440, %v1105
        %1107 = vmatpush.msra.mxu0 %v1106
        %v1108 = vand.u32 %v438, 4294901760
        %v1109 = vsub.f32 %v438, %v1108
        %1110 = vmatpush.msra.mxu0 %v1109
        %v1111 = vand.u32 %v830, 4294901760
        %v1112 = vsub.f32 %v830, %v1111
        %1113 = vmatmul.f32.gmra.mxu0 %v1112
        %v1114 = vpop.f32.mrf.mxu0
        %v1115 = vadd.f32 %v1085, %v1114
        %1116 = vdwg.mxu0
        %1117 = vmatpush.msra.mxu0 0.0
        %1118 = vmatpush.msra.mxu0 0.0
        %1119 = vmatpush.msra.mxu0 0.0
        %1120 = vmatpush.msra.mxu0 0.0
        %1121 = vmatpush.msra.mxu0 0.0
        %1122 = vmatpush.msra.mxu0 0.0
        %1123 = vmatpush.msra.mxu0 0.0
        %1124 = vmatpush.msra.mxu0 0.0
        %1125 = vmatpush.msra.mxu0 0.0
        %1126 = vmatpush.msra.mxu0 0.0
        %1127 = vmatpush.msra.mxu0 0.0
        %1128 = vmatpush.msra.mxu0 0.0
        %v1129 = vand.u32 %v444, 4294901760
        %1130 = vmatpush.msra.mxu0 %v1129
        %v1131 = vand.u32 %v442, 4294901760
        %1132 = vmatpush.msra.mxu0 %v1131
        %v1133 = vand.u32 %v440, 4294901760
        %1134 = vmatpush.msra.mxu0 %v1133
        %v1135 = vand.u32 %v438, 4294901760
        %1136 = vmatpush.msra.mxu0 %v1135
        %v1137 = vand.u32 %v830, 4294901760
        %v1138 = vsub.f32 %v830, %v1137
        %v1139 = vand.u32 %v1138, 4294901760
        %1140 = vmatmul.f32.gmra.mxu0 %v1139
        %v1141 = vpop.f32.mrf.mxu0
        %v1142 = vadd.f32 %v1115, %v1141
        %1143 = vdwg.mxu0
        %1144 = vmatpush.msra.mxu0 0.0
        %1145 = vmatpush.msra.mxu0 0.0
        %1146 = vmatpush.msra.mxu0 0.0
        %1147 = vmatpush.msra.mxu0 0.0
        %1148 = vmatpush.msra.mxu0 0.0
        %1149 = vmatpush.msra.mxu0 0.0
        %1150 = vmatpush.msra.mxu0 0.0
        %1151 = vmatpush.msra.mxu0 0.0
        %1152 = vmatpush.msra.mxu0 0.0
        %1153 = vmatpush.msra.mxu0 0.0
        %1154 = vmatpush.msra.mxu0 0.0
        %1155 = vmatpush.msra.mxu0 0.0
        %v1156 = vand.u32 %v444, 4294901760
        %v1157 = vsub.f32 %v444, %v1156
        %v1158 = vand.u32 %v1157, 4294901760
        %1159 = vmatpush.msra.mxu0 %v1158
        %v1160 = vand.u32 %v442, 4294901760
        %v1161 = vsub.f32 %v442, %v1160
        %v1162 = vand.u32 %v1161, 4294901760
        %1163 = vmatpush.msra.mxu0 %v1162
        %v1164 = vand.u32 %v440, 4294901760
        %v1165 = vsub.f32 %v440, %v1164
        %v1166 = vand.u32 %v1165, 4294901760
        %1167 = vmatpush.msra.mxu0 %v1166
        %v1168 = vand.u32 %v438, 4294901760
        %v1169 = vsub.f32 %v438, %v1168
        %v1170 = vand.u32 %v1169, 4294901760
        %1171 = vmatpush.msra.mxu0 %v1170
        %v1172 = vand.u32 %v830, 4294901760
        %1173 = vmatmul.f32.gmra.mxu0 %v1172
        %v1174 = vpop.f32.mrf.mxu0
        %v1175 = vadd.f32 %v1142, %v1174
        %1176 = vdwg.mxu0
        %1177 = vmatpush.msra.mxu0 0.0
        %1178 = vmatpush.msra.mxu0 0.0
        %1179 = vmatpush.msra.mxu0 0.0
        %1180 = vmatpush.msra.mxu0 0.0
        %1181 = vmatpush.msra.mxu0 0.0
        %1182 = vmatpush.msra.mxu0 0.0
        %1183 = vmatpush.msra.mxu0 0.0
        %1184 = vmatpush.msra.mxu0 0.0
        %1185 = vmatpush.msra.mxu0 0.0
        %1186 = vmatpush.msra.mxu0 0.0
        %1187 = vmatpush.msra.mxu0 0.0
        %1188 = vmatpush.msra.mxu0 0.0
        %v1189 = vand.u32 %v444, 4294901760
        %1190 = vmatpush.msra.mxu0 %v1189
        %v1191 = vand.u32 %v442, 4294901760
        %1192 = vmatpush.msra.mxu0 %v1191
        %v1193 = vand.u32 %v440, 4294901760
        %1194 = vmatpush.msra.mxu0 %v1193
        %v1195 = vand.u32 %v438, 4294901760
        %1196 = vmatpush.msra.mxu0 %v1195
        %v1197 = vand.u32 %v830, 4294901760
        %1198 = vmatmul.f32.gmra.mxu0 %v1197
        %v1199 = vpop.f32.mrf.mxu0
        %v1200 = vadd.f32 %v1175, %v1199
        %1201 = vdwg.mxu0
        %s1202 = sld [smem:[#allocation2]]
        %v1203 = vstv %s1202
        %v1204 = vadd.f32 %v1015, %v1203
        %v1205 = vadd.f32 %v1200, %v1203
        %v1206 = vxor.u32 %v1204, 2147483648
        %v1207 = vxor.u32 %v1205, 2147483648
        %v1208 = vmul.f32 %v1206, 1.442695
        %v1209 = vpow.pop %v1208
        %v1210 = vmul.f32 %v1207, 1.442695
        %v1211 = vpow.pop %v1210
        %v1212 = vadd.f32 %v1209, 1.0
        %v1213 = vadd.f32 %v1211, 1.0
        %v1214 = vrcp.pop %v1212
        %v1215 = vmul.f32 %v1212, %v1214
        %v1216 = vsub.f32 1.0, %v1215
        %v1217 = vmul.f32 %v1214, %v1216
        %v1218 = vadd.f32 %v1214, %v1217
        %vm1219 = vweird.f32 %v1212
        %vm1220 = vweird.f32 %v1214
        %vm1221 = vmor %vm1219, %vm1220
        %v1222 = vsel %vm1221, %v1214, %v1218
        %v1223 = vand.u32 2147483647, %v1212
        %vm1224 = vcmp.eq.f32.partialorder %v1223, 8.507059e+37
        %v1225 = vand.u32 %v1212, 2147483648
        %v1226 = vor.u32 1.1754944e-38, %v1225
        %v1227 = vsel %vm1224, %v1226, %v1222
        %v1228 = vmul.f32 1.0, %v1227
        %v1229 = vrcp.pop %v1213
        %v1230 = vmul.f32 %v1213, %v1229
        %v1231 = vsub.f32 1.0, %v1230
        %v1232 = vmul.f32 %v1229, %v1231
        %v1233 = vadd.f32 %v1229, %v1232
        %vm1234 = vweird.f32 %v1213
        %vm1235 = vweird.f32 %v1229
        %vm1236 = vmor %vm1234, %vm1235
        %v1237 = vsel %vm1236, %v1229, %v1233
        %v1238 = vand.u32 2147483647, %v1213
        %vm1239 = vcmp.eq.f32.partialorder %v1238, 8.507059e+37
        %v1240 = vand.u32 %v1213, 2147483648
        %v1241 = vor.u32 1.1754944e-38, %v1240
        %v1242 = vsel %vm1239, %v1241, %v1237
        %v1243 = vmul.f32 1.0, %v1242
        %v1244 = vsub.f32 1.0, %v1228
        %v1245 = vsub.f32 1.0, %v1243
        %v1246 = vperm.slane %v1228, 0
        %v1247 = vperm.slane %v1243, 0
        %v1248 = vmul.f32 %v437, %v1246
        %v1249 = vmul.f32 %v438, %v1247
        %v1250 = vmul.f32 %v439, %v1246
        %v1251 = vmul.f32 %v440, %v1247
        %v1252 = vmul.f32 %v441, %v1246
        %v1253 = vmul.f32 %v442, %v1247
        %v1254 = vmul.f32 %v443, %v1246
        %v1255 = vmul.f32 %v444, %v1247
        %v1256 = vperm.slane %v1244, 0
        %v1257 = vperm.slane %v1245, 0
        %v1258 = vmul.f32 %v445, %v1256
        %v1259 = vmul.f32 %v446, %v1257
        %v1260 = vmul.f32 %v447, %v1256
        %v1261 = vmul.f32 %v448, %v1257
        %v1262 = vmul.f32 %v449, %v1256
        %v1263 = vmul.f32 %v450, %v1257
        %v1264 = vmul.f32 %v451, %v1256
        %v1265 = vmul.f32 %v452, %v1257
        %v1266 = vadd.f32 %v1248, %v1258
        %v1267 = vadd.f32 %v1249, %v1259
        %v1268 = vadd.f32 %v1250, %v1260
        %v1269 = vadd.f32 %v1251, %v1261
        %v1270 = vadd.f32 %v1252, %v1262
        %v1271 = vadd.f32 %v1253, %v1263
        %v1272 = vadd.f32 %v1254, %v1264
        %v1273 = vadd.f32 %v1255, %v1265
        %1274 = vst [vmem:[%s428] sm:$0xff] %v1266
        %1275 = vst [vmem:[%s428 + $0x8] sm:$0xff] %v1267
        %1276 = vst [vmem:[%s428 + $0x10] sm:$0xff] %v1268
        %1277 = vst [vmem:[%s428 + $0x18] sm:$0xff] %v1269
        %1278 = vst [vmem:[%s428 + $0x20] sm:$0xff] %v1270
        %1279 = vst [vmem:[%s428 + $0x28] sm:$0xff] %v1271
        %1280 = vst [vmem:[%s428 + $0x30] sm:$0xff] %v1272
        %1281 = vst [vmem:[%s428 + $0x38] sm:$0xff] %v1273
        %v1282 = vadd.f32 %v437, %v1266
        %v1283 = vadd.f32 %v438, %v1267
        %v1284 = vadd.f32 %v439, %v1268
        %v1285 = vadd.f32 %v440, %v1269
        %v1286 = vadd.f32 %v441, %v1270
        %v1287 = vadd.f32 %v442, %v1271
        %v1288 = vadd.f32 %v443, %v1272
        %v1289 = vadd.f32 %v444, %v1273
        %v1290 = vmul.f32 %v1282, 0.5
        %v1291 = vmul.f32 %v1283, 0.5
        %v1292 = vmul.f32 %v1284, 0.5
        %v1293 = vmul.f32 %v1285, 0.5
        %v1294 = vmul.f32 %v1286, 0.5
        %v1295 = vmul.f32 %v1287, 0.5
        %v1296 = vmul.f32 %v1288, 0.5
        %v1297 = vmul.f32 %v1289, 0.5
        %v1298 = vmax.f32 %v1290, 0.0
        %v1299 = vmax.f32 %v1291, 0.0
        %v1300 = vmax.f32 %v1292, 0.0
        %v1301 = vmax.f32 %v1293, 0.0
        %v1302 = vmax.f32 %v1294, 0.0
        %v1303 = vmax.f32 %v1295, 0.0
        %v1304 = vmax.f32 %v1296, 0.0
        %v1305 = vmax.f32 %v1297, 0.0
        %1306 = vst [vmem:[%s414] sm:$0xff] %v1298
        %1307 = vst [vmem:[%s414 + $0x8] sm:$0xff] %v1299
        %1308 = vst [vmem:[%s414 + $0x10] sm:$0xff] %v1300
        %1309 = vst [vmem:[%s414 + $0x18] sm:$0xff] %v1301
        %1310 = vst [vmem:[%s414 + $0x20] sm:$0xff] %v1302
        %1311 = vst [vmem:[%s414 + $0x28] sm:$0xff] %v1303
        %1312 = vst [vmem:[%s414 + $0x30] sm:$0xff] %v1304
        %1313 = vst [vmem:[%s414 + $0x38] sm:$0xff] %v1305
        %v1314 = vadd.f32 %v445, %v1266
        %v1315 = vadd.f32 %v446, %v1267
        %v1316 = vadd.f32 %v447, %v1268
        %v1317 = vadd.f32 %v448, %v1269
        %v1318 = vadd.f32 %v449, %v1270
        %v1319 = vadd.f32 %v450, %v1271
        %v1320 = vadd.f32 %v451, %v1272
        %v1321 = vadd.f32 %v452, %v1273
        %v1322 = vmul.f32 %v1314, 0.5
        %v1323 = vmul.f32 %v1315, 0.5
        %v1324 = vmul.f32 %v1316, 0.5
        %v1325 = vmul.f32 %v1317, 0.5
        %v1326 = vmul.f32 %v1318, 0.5
        %v1327 = vmul.f32 %v1319, 0.5
        %v1328 = vmul.f32 %v1320, 0.5
        %v1329 = vmul.f32 %v1321, 0.5
        %v1330 = vmax.f32 %v1322, 0.0
        %v1331 = vmax.f32 %v1323, 0.0
        %v1332 = vmax.f32 %v1324, 0.0
        %v1333 = vmax.f32 %v1325, 0.0
        %v1334 = vmax.f32 %v1326, 0.0
        %v1335 = vmax.f32 %v1327, 0.0
        %v1336 = vmax.f32 %v1328, 0.0
        %v1337 = vmax.f32 %v1329, 0.0
        %1338 = vst [vmem:[%s421] sm:$0xff] %v1330
        %1339 = vst [vmem:[%s421 + $0x8] sm:$0xff] %v1331
        %1340 = vst [vmem:[%s421 + $0x10] sm:$0xff] %v1332
        %1341 = vst [vmem:[%s421 + $0x18] sm:$0xff] %v1333
        %1342 = vst [vmem:[%s421 + $0x20] sm:$0xff] %v1334
        %1343 = vst [vmem:[%s421 + $0x28] sm:$0xff] %v1335
        %1344 = vst [vmem:[%s421 + $0x30] sm:$0xff] %v1336
        %1345 = vst [vmem:[%s421 + $0x38] sm:$0xff] %v1337
        %s1346 = sand.u32 %s183, 1
        %s1347 = scalar_lea.sflag [#allocation5], %s1346
        %s1348 = sand.u32 %s183, 1
        %s1349 = smul.addr %s1348, 64
        %s1350 = scalar_lea.vmem [#allocation9], %s1349
        %s1351 = sand.u32 %s32, 1
        %s1352 = scalar_lea.sflag [#allocation11], %s1351
        %s1353 = sand.u32 %s211, 1
        %s1354 = smul.addr %s1353, 64
        %s1355 = scalar_lea.vmem [#allocation10], %s1354
        %s1356 = sand.u32 %s32, 1
        %s1357 = scalar_lea.sflag [#allocation11], %s1356
        %s1358 = sand.u32 %s239, 1
        %s1359 = smul.addr %s1358, 64
        %s1360 = scalar_lea.vmem [#allocation12], %s1359
        // Predicated region
        $region53: #{tpu_custom_call.1} parent=39 // pred_check
          %p1361 = pneg %p193
        $region54: #{tpu_custom_call.1} parent=39 // pred_check_branch
          %1363 = sbr.rel (%p1361) target = $region56
        $region55: #{tpu_custom_call.1} parent=39 // pred_region
          %s1364 = smul.u32 2, %s37
          %1366 = vsyncadd %s1347, 0
          %s1367 = smul.addr %s36, 8
          %s1368 = sadd.s32 %s1364, %s1367
          %s1369 = smul.addr %s1368, 8
          %s1370 = scalar_lea.hbm %s5, %s1369
          %s1371 = sshll.u32 %s1350, 4
          %s1372 = int_to_ptr.vmem [resolvable:$true] %s1371
          %s1373 = sshll.u32 %s1370, 4
          %s1374 = int_to_ptr.hbm [resolvable:$true] %s1373
          %1379 = dma.vmem_to_hbm [thread:$0]  %s1372, 1024, %s1374, %s1347, 256, 256, 16
        $region56: #{tpu_custom_call.1} parent=39 // pred_fallthru
          _
        // Predicated region
        $region57: #{tpu_custom_call.1} parent=39 // pred_check
          %p1380 = pneg %p221
        $region58: #{tpu_custom_call.1} parent=39 // pred_check_branch
          %1382 = sbr.rel (%p1380) target = $region60
        $region59: #{tpu_custom_call.1} parent=39 // pred_region
          %s1383 = smul.u32 2, %s37
          %1385 = vsyncadd %s1352, 0
          %s1386 = smul.addr %s36, 8
          %s1387 = sadd.s32 %s1383, %s1386
          %s1388 = smul.addr %s1387, 8
          %s1389 = scalar_lea.hbm %s6, %s1388
          %s1390 = sshll.u32 %s1355, 4
          %s1391 = int_to_ptr.vmem [resolvable:$true] %s1390
          %s1392 = sshll.u32 %s1389, 4
          %s1393 = int_to_ptr.hbm [resolvable:$true] %s1392
          %1398 = dma.vmem_to_hbm [thread:$0]  %s1391, 1024, %s1393, %s1352, 256, 256, 16
        $region60: #{tpu_custom_call.1} parent=39 // pred_fallthru
          _
        // Predicated region
        $region61: #{tpu_custom_call.1} parent=39 // pred_check
          %p1399 = pneg %p249
        $region62: #{tpu_custom_call.1} parent=39 // pred_check_branch
          %1401 = sbr.rel (%p1399) target = $region64
        $region63: #{tpu_custom_call.1} parent=39 // pred_region
          %s1402 = smul.u32 2, %s37
          %1404 = vsyncadd %s1357, 0
          %s1405 = smul.addr %s36, 8
          %s1406 = sadd.s32 %s1402, %s1405
          %s1407 = smul.addr %s1406, 8
          %s1408 = scalar_lea.hbm %s7, %s1407
          %s1409 = sshll.u32 %s1360, 4
          %s1410 = int_to_ptr.vmem [resolvable:$true] %s1409
          %s1411 = sshll.u32 %s1408, 4
          %s1412 = int_to_ptr.hbm [resolvable:$true] %s1411
          %1417 = dma.vmem_to_hbm [thread:$0]  %s1410, 1024, %s1412, %s1357, 256, 256, 16
        $region64: #{tpu_custom_call.1} parent=39 // pred_fallthru
          _
      $region40: #{tpu_custom_call.1} parent=5 // pred_fallthru
        _
      %p1418 = scmp.le.s32.totalorder 2, %s27
      // Predicated region
      $region65: #{tpu_custom_call.1} parent=5 // pred_check
        %p1419 = pneg %p1418
      $region66: #{tpu_custom_call.1} parent=5 // pred_check_branch
        %1421 = sbr.rel (%p1419) target = $region68
      $region67: #{tpu_custom_call.1} parent=5 // pred_region
        %s1422 = ssub.s32 %s27, 2
        // Predicated region
        $region69: #{tpu_custom_call.1} parent=67 // pred_check
          %p1423 = pneg %p199
        $region70: #{tpu_custom_call.1} parent=67 // pred_check_branch
          %1425 = sbr.rel (%p1423) target = $region72
        $region71: #{tpu_custom_call.1} parent=67 // pred_region
          %s1426 = sand.u32 %s184, 1
          %s1427 = scalar_lea.sflag [#allocation5], %s1426
          %s1428 = sand.u32 %s184, 1
          %s1429 = smul.addr %s1428, 64
          %s1430 = scalar_lea.vmem [#allocation9], %s1429
          %1432 = dma.done %s1427, 1024
        $region72: #{tpu_custom_call.1} parent=67 // pred_fallthru
          _
        // Predicated region
        $region73: #{tpu_custom_call.1} parent=67 // pred_check
          %p1433 = pneg %p227
        $region74: #{tpu_custom_call.1} parent=67 // pred_check_branch
          %1435 = sbr.rel (%p1433) target = $region76
        $region75: #{tpu_custom_call.1} parent=67 // pred_region
          %s1436 = sand.u32 %s33, 1
          %s1437 = scalar_lea.sflag [#allocation11], %s1436
          %s1438 = sand.u32 %s212, 1
          %s1439 = smul.addr %s1438, 64
          %s1440 = scalar_lea.vmem [#allocation10], %s1439
          %1442 = dma.done %s1437, 1024
        $region76: #{tpu_custom_call.1} parent=67 // pred_fallthru
          _
        // Predicated region
        $region77: #{tpu_custom_call.1} parent=67 // pred_check
          %p1443 = pneg %p255
        $region78: #{tpu_custom_call.1} parent=67 // pred_check_branch
          %1445 = sbr.rel (%p1443) target = $region80
        $region79: #{tpu_custom_call.1} parent=67 // pred_region
          %s1446 = sand.u32 %s33, 1
          %s1447 = scalar_lea.sflag [#allocation11], %s1446
          %s1448 = sand.u32 %s240, 1
          %s1449 = smul.addr %s1448, 64
          %s1450 = scalar_lea.vmem [#allocation12], %s1449
          %1452 = dma.done %s1447, 1024
        $region80: #{tpu_custom_call.1} parent=67 // pred_fallthru
          _
      $region68: #{tpu_custom_call.1} parent=5 // pred_fallthru
        _
    $region6: #{tpu_custom_call.1} parent=1 // loop_footer
      %s31 = sadd.s32 1, %s27
    $region7: #{tpu_custom_call.1} parent=1 // loop_footer_branch
      %26 = sbr.rel target = $region3
    $region8: #{tpu_custom_call.1} parent=1 // loop_exit
      _
    %1453 = vsyncpa [#allocation4], 1
    %s1454 = scalar_lea.sflag [#allocation4], 1
    %1455 = vsyncpa %s1454, 1
    %1456 = vsyncpa [#allocation7], 1
    %s1457 = scalar_lea.sflag [#allocation7], 1
    %1458 = vsyncpa %s1457, 1
    %1459 = vsyncpa [#allocation5], 1
    %s1460 = scalar_lea.sflag [#allocation5], 1
    %1461 = vsyncpa %s1460, 1
    %1462 = vsyncpa [#allocation11], 1
    %s1463 = scalar_lea.sflag [#allocation11], 1
    %1464 = vsyncpa %s1463, 1

</llo_original>
